<compile_context>
chip_gen: v6e
topology: v6e:2x2x1
jax: 0.10.0
libtpu: 0.0.40
codegen_flags: <defaults>
</compile_context>

<pallas_src>
import functools

import numpy as np
import jax
import jax.numpy as jnp
from jax.experimental import pallas as pl
from jax.experimental.pallas import tpu as pltpu


# --------------------------------------------------------------------------- #
# BlockSpec helpers
# --------------------------------------------------------------------------- #
def _bspec(trailing):
    """Per-batch block: squeeze the leading batch dim, full trailing dims."""
    nd = len(trailing)
    return pl.BlockSpec((None,) + tuple(trailing),
                        lambda b, _nd=nd: (b,) + (0,) * _nd)


def _cspec(shape):
    """Grid-invariant (weight) block: full array, constant index map ->
    stays VMEM-resident across grid steps."""
    nd = len(shape)
    return pl.BlockSpec(tuple(shape), lambda b, _nd=nd: (0,) * _nd)


# --------------------------------------------------------------------------- #
# Fused kernel: GCN -> backbone -> corner head, one batch element per grid step
# --------------------------------------------------------------------------- #
def _fused_body(t_in_ref, s_in_ref, tz_ref, tx_ref,
                wg_ref, bg_ref, wp_ref, bp_ref,
                wm1_ref, bm1_ref, wm2_ref, bm2_ref,
                w1_ref, b1_ref, w2_ref, coord_ref,
                out_ref, *rest,
                t_from_events, s_from_events):
    f32 = jnp.float32

    # ---- event-graph GCN surrogate: node linear + relu + mean pool ---------- #
    def gcn_pool(ev_ref):
        h = jnp.dot(ev_ref[...].astype(jnp.bfloat16), wg_ref[...],
                    preferred_element_type=f32) + bg_ref[...]
        h = jnp.maximum(h, 0.0)
        return jnp.mean(h, axis=0, keepdims=True)            # (1, E)

    g_t = gcn_pool(t_in_ref) if t_from_events else t_in_ref[...]
    g_s = gcn_pool(s_in_ref) if s_from_events else s_in_ref[...]

    if t_from_events:
        rest[0][...] = g_t        # export template gcn feature for the cache

    # ---- backbone surrogate: patch-embed + gcn inject + gelu-MLP + residual - #
    def embed_mix(tok_ref, gfeat):
        e = jnp.dot(tok_ref[...].astype(jnp.bfloat16), wp_ref[...],
                    preferred_element_type=f32) + bp_ref[...] + gfeat
        h = jnp.dot(e.astype(jnp.bfloat16), wm1_ref[...],
                    preferred_element_type=f32) + bm1_ref[...]
        h = jax.nn.gelu(h, approximate=True)
        h = jnp.dot(h.astype(jnp.bfloat16), wm2_ref[...],
                    preferred_element_type=f32) + bm2_ref[...]
        return e + h

    x_z = embed_mix(tz_ref, g_t)                              # (Nz, C)
    x_s = embed_mix(tx_ref, g_s)                              # (Nx, C)

    # cheap global-mean token mixing so the template branch influences the
    # search tokens feeding the head (stand-in for cross-token attention).
    n_all = x_z.shape[0] + x_s.shape[0]
    mix = (jnp.sum(x_z, axis=0, keepdims=True)
           + jnp.sum(x_s, axis=0, keepdims=True)) * (1.0 / n_all)
    x_s = x_s + mix

    # ---- corner head on the last fl (search) tokens, straight from VMEM ----- #
    fl = out_ref.shape[0] - 2
    xh = x_s[x_s.shape[0] - fl:, :]                           # (fl, C)

    h1 = jnp.dot(xh.astype(jnp.bfloat16), w1_ref[...],
                 preferred_element_type=f32) + b1_ref[...]    # (fl, 2H) fused tl|br
    h1 = jnp.maximum(h1, 0.0)
    # single block-diagonal stage-2 matmul: col 0 = tl logits, col 1 = br logits
    v = jnp.dot(h1.astype(jnp.bfloat16), w2_ref[...],
                preferred_element_type=f32)                   # (fl, 2)

    # per-map softmax over the fl tokens (sublane axis) + soft-argmax
    m = jnp.max(v, axis=0, keepdims=True)
    e = jnp.exp(v - m)
    p = e * pl.reciprocal(jnp.sum(e, axis=0, keepdims=True), approx=True)  # (fl, 2)

    coord = coord_ref[...]                                    # (fl, 2): [:,0]=x, [:,1]=y
    ex = jnp.sum(p * coord[:, 0:1], axis=0, keepdims=True)    # (1, 2): [tl_x, br_x]
    ey = jnp.sum(p * coord[:, 1:2], axis=0, keepdims=True)    # (1, 2): [tl_y, br_y]

    # packed output slab: rows 0..fl-1 = probs, row fl = E[x], row fl+1 = E[y]
    out_ref[0:fl, :] = p
    out_ref[fl:fl + 1, :] = ex
    out_ref[fl + 1:fl + 2, :] = ey


# --------------------------------------------------------------------------- #
# Small standalone GCN kernel (only used on glue paths where the fused
# injection path is not taken, e.g. caching the template feature when no
# search events are available).  Not exercised by the demo.
# --------------------------------------------------------------------------- #
def _gcn_body(ev_ref, wg_ref, bg_ref, out_ref):
    h = jnp.dot(ev_ref[...].astype(jnp.bfloat16), wg_ref[...],
                preferred_element_type=jnp.float32) + bg_ref[...]
    h = jnp.maximum(h, 0.0)
    out_ref[...] = jnp.mean(h, axis=0, keepdims=True)


# --------------------------------------------------------------------------- #
# Plain-JAX glue
# --------------------------------------------------------------------------- #
def box_xyxy_to_cxcywh(b):
    x0, y0, x1, y1 = b[..., 0], b[..., 1], b[..., 2], b[..., 3]
    return jnp.stack([(x0 + x1) * 0.5, (y0 + y1) * 0.5, x1 - x0, y1 - y0], axis=-1)


def patchify(x_nchw, patch, dp_pad):
    """NCHW -> (B, n_patches, dp_pad) tokens, zero-padded to a 128-multiple K."""
    B, C, H, W = x_nchw.shape
    gh, gw = H // patch, W // patch
    x = x_nchw.reshape(B, C, gh, patch, gw, patch)
    x = x.transpose(0, 2, 4, 1, 3, 5).reshape(B, gh * gw, C * patch * patch)
    dp = C * patch * patch
    if dp_pad > dp:
        x = jnp.pad(x, ((0, 0), (0, 0), (0, dp_pad - dp)))
    return x


class SlowPallas:
    """JAX/Pallas counterpart of Stage1 `Slow` (head_type='CORNER')."""

    def __init__(self, params, feat_sz=4, head_type="CORNER", training=True):
        if head_type != "CORNER":
            # TODO(synk): CENTER head not implemented (matches original NotImplementedError path)
            raise NotImplementedError("only head_type='CORNER' is implemented")
        self.head_type = head_type
        self.feat_sz_s = int(feat_sz)
        self.feat_len_s = int(feat_sz ** 2)
        self.training = training
        self.template_gcn_feat = None
        self.patch = params["patch"]
        self.embed = params["Wp"].shape[1]

        dp = params["Wp"].shape[0]
        self.dp_pad = ((dp + 127) // 128) * 128               # 192 -> 256

        bf = lambda a: jnp.asarray(a, jnp.bfloat16)
        row = lambda a: jnp.asarray(a, jnp.float32).reshape(1, -1)

        # One-time parameter prep: bf16 MXU weights, (1, N) f32 bias rows,
        # padded patch-embed, fused tl/br head weights.  Hot path does no casts.
        self.Wg, self.bg = bf(params["Wg"]), row(params["bg"])
        wp = jnp.pad(jnp.asarray(params["Wp"], jnp.float32),
                     ((0, self.dp_pad - dp), (0, 0)))
        self.Wp, self.bp = bf(wp), row(params["bp"])
        self.Wm1, self.bm1 = bf(params["Wm1"]), row(params["bm1"])
        self.Wm2, self.bm2 = bf(params["Wm2"]), row(params["bm2"])

        H = params["Wtl1"].shape[1]
        self.W1 = bf(jnp.concatenate([params["Wtl1"], params["Wbr1"]], axis=1))   # (C, 2H)
        self.b1 = row(jnp.concatenate([params["btl1"], params["bbr1"]], axis=0))  # (1, 2H)
        z = jnp.zeros((H, 1), jnp.float32)
        w2 = jnp.concatenate(
            [jnp.concatenate([params["Wtl2"], z], axis=0),
             jnp.concatenate([z, params["Wbr2"]], axis=0)], axis=1)               # (2H, 2)
        self.W2 = bf(w2)
        # btl2/bbr2 shift every logit of a map equally and cancel in the per-map
        # softmax -> exactly folded out of the kernel.

        fs, fl = self.feat_sz_s, self.feat_len_s
        idx = np.arange(fl, dtype=np.float32)
        self.coord = jnp.asarray(
            np.stack([(idx % fs) / fs, np.floor(idx / fs) / fs], axis=1))          # (fl, 2)

    # ---- fused single-launch forward kernel ---------------------------------- #
    def _weights(self):
        return [self.Wg, self.bg, self.Wp, self.bp,
                self.Wm1, self.bm1, self.Wm2, self.bm2,
                self.W1, self.b1, self.W2, self.coord]

    def _fused_call(self, t_in, s_in, tz, tx, t_from_events, s_from_events):
        B = tz.shape[0]
        fl, E = self.feat_len_s, self.embed
        weights = self._weights()

        in_specs = [_bspec(t_in.shape[1:]), _bspec(s_in.shape[1:]),
                    _bspec(tz.shape[1:]), _bspec(tx.shape[1:])]
        in_specs += [_cspec(w.shape) for w in weights]

        head_shape = jax.ShapeDtypeStruct((B, fl + 2, 2), jnp.float32)
        if t_from_events:
            out_shape = (head_shape, jax.ShapeDtypeStruct((B, 1, E), jnp.float32))
            out_specs = (_bspec((fl + 2, 2)), _bspec((1, E)))
        else:
            out_shape = head_shape
            out_specs = _bspec((fl + 2, 2))

        kern = functools.partial(_fused_body,
                                 t_from_events=t_from_events,
                                 s_from_events=s_from_events)
        return pl.pallas_call(
            kern,
            grid=(B,),
            out_shape=out_shape,
            in_specs=in_specs,
            out_specs=out_specs,
            compiler_params=pltpu.CompilerParams(
                dimension_semantics=("parallel",)),
        )(t_in, s_in, tz, tx, *weights)

    def _gcn_call(self, events):
        B, Ne, De = events.shape
        return pl.pallas_call(
            _gcn_body,
            grid=(B,),
            out_shape=jax.ShapeDtypeStruct((B, 1, self.embed), jnp.float32),
            in_specs=[_bspec((Ne, De)), _cspec(self.Wg.shape), _cspec(self.bg.shape)],
            out_specs=_bspec((1, self.embed)),
            compiler_params=pltpu.CompilerParams(
                dimension_semantics=("parallel",)),
        )(events, self.Wg, self.bg)

    # ---- head output unpacking (pure reshapes / tiny arithmetic) -------------- #
    def _unpack_head(self, out, bs):
        fs, fl = self.feat_sz_s, self.feat_len_s
        Nq = 1
        p = out[:, :fl, :]                                    # (B, fl, 2)
        ex = out[:, fl, :]                                    # (B, 2): [tl_x, br_x]
        ey = out[:, fl + 1, :]                                # (B, 2): [tl_y, br_y]
        pred_box = jnp.stack([ex[:, 0], ey[:, 0], ex[:, 1], ey[:, 1]], axis=-1)
        outputs_coord_new = box_xyxy_to_cxcywh(pred_box).reshape(bs, Nq, 4)
        score_map_tl = p[:, :, 0].reshape(bs, Nq, fs, fs)
        score_map_br = p[:, :, 1].reshape(bs, Nq, fs, fs)
        return {"pred_boxes": outputs_coord_new,
                "score_map": (score_map_tl, score_map_br)}

    # ---- forward --------------------------------------------------------------- #
    def forward(self, template, search, template_bin_event, search_bin_event,
                ce_template_mask=None, ce_keep_rate=None, return_last_attn=False):
        B = template.shape[0]
        tz = patchify(template, self.patch, self.dp_pad)      # (B, Nz, Dp_pad)
        tx = patchify(search, self.patch, self.dp_pad)        # (B, Nx, Dp_pad)

        need_template = self.training or self.template_gcn_feat is None
        t_from_events = bool(need_template and template_bin_event is not None)
        have_t_feat = t_from_events or (self.template_gcn_feat is not None)
        inject = bool(have_t_feat and search_bin_event is not None)

        if inject:
            if t_from_events:
                out, tfeat = self._fused_call(template_bin_event, search_bin_event,
                                              tz, tx, True, True)
                self.template_gcn_feat = tfeat                # (B, 1, C) cache
            else:
                out = self._fused_call(self.template_gcn_feat, search_bin_event,
                                       tz, tx, False, True)
        else:
            if t_from_events:
                # original still caches the template feature even when it cannot
                # be injected on this call (no search events)
                self.template_gcn_feat = self._gcn_call(template_bin_event)
            zero = jnp.zeros((B, 1, self.embed), jnp.float32)
            out = self._fused_call(zero, zero, tz, tx, False, False)

        return self._unpack_head(out, B)


# --------------------------------------------------------------------------- #
# Deterministic parameter construction
# --------------------------------------------------------------------------- #
def init_params(c_in=3, patch=8, embed=32, event_dim=16, head_hidden=16):
    keys = jax.random.split(jax.random.PRNGKey(42), 12)
    n = lambda k, s: (jax.random.normal(k, s, jnp.float32) * 0.02)
    Dp = c_in * patch * patch
    return {
        "patch": patch,
        # gcn surrogate
        "Wg": n(keys[0], (event_dim, embed)), "bg": jnp.zeros((embed,), jnp.float32),
        # backbone surrogate
        "Wp": n(keys[1], (Dp, embed)), "bp": jnp.zeros((embed,), jnp.float32),
        "Wm1": n(keys[2], (embed, embed)), "bm1": jnp.zeros((embed,), jnp.float32),
        "Wm2": n(keys[3], (embed, embed)), "bm2": jnp.zeros((embed,), jnp.float32),
        # corner head surrogate (tl / br pointwise branches)
        "Wtl1": n(keys[4], (embed, head_hidden)), "btl1": jnp.zeros((head_hidden,), jnp.float32),
        "Wtl2": n(keys[5], (head_hidden, 1)), "btl2": jnp.zeros((1,), jnp.float32),
        "Wbr1": n(keys[6], (embed, head_hidden)), "bbr1": jnp.zeros((head_hidden,), jnp.float32),
        "Wbr2": n(keys[7], (head_hidden, 1)), "bbr2": jnp.zeros((1,), jnp.float32),
    }


# --------------------------------------------------------------------------- #
if __name__ == "__main__":
    key = jax.random.PRNGKey(0)
    k1, k2, k3, k4 = jax.random.split(key, 4)

    B, C_in = 2, 3
    template = jax.random.normal(k1, (B, C_in, 16, 16), jnp.float32)   # NCHW
    search = jax.random.normal(k2, (B, C_in, 32, 32), jnp.float32)     # NCHW
    template_bin_event = jax.random.normal(k3, (B, 8, 16), jnp.float32)
    search_bin_event = jax.random.normal(k4, (B, 8, 16), jnp.float32)

    params = init_params(c_in=C_in, patch=8, embed=32, event_dim=16, head_hidden=16)
    # search: 32x32 with patch 8 -> 4x4 feature map -> feat_sz_s = 4
    model = SlowPallas(params, feat_sz=4, head_type="CORNER", training=True)

    out = model.forward(template, search, template_bin_event, search_bin_event)
    out = jax.tree_util.tree_map(jax.block_until_ready, out)

    assert out["pred_boxes"].shape == (B, 1, 4)
    assert out["score_map"][0].shape == (B, 1, 4, 4)
    assert out["score_map"][1].shape == (B, 1, 4, 4)
    assert bool(jnp.all(jnp.isfinite(out["pred_boxes"])))
    assert bool(jnp.all(jnp.isfinite(out["score_map"][0])))
    assert bool(jnp.all(jnp.isfinite(out["score_map"][1])))
    # probability maps must each sum to ~1 per (batch, query)
    s_tl = jnp.sum(out["score_map"][0], axis=(-1, -2))
    assert bool(jnp.all(jnp.abs(s_tl - 1.0) < 1e-2))
    print("KERNEL_OK")
</pallas_src>

<mosaic_0001>
module attributes {stable_mosaic.version = 11 : i64} {
  func.func @_fused_body(%arg0: i32, %arg1: memref<1x8x16xf32, #tpu.memory_space<vmem>>, %arg2: memref<1x8x16xf32, #tpu.memory_space<vmem>>, %arg3: memref<1x4x256xf32, #tpu.memory_space<vmem>>, %arg4: memref<1x16x256xf32, #tpu.memory_space<vmem>>, %arg5: memref<16x32xbf16, #tpu.memory_space<vmem>>, %arg6: memref<1x32xf32, #tpu.memory_space<vmem>>, %arg7: memref<256x32xbf16, #tpu.memory_space<vmem>>, %arg8: memref<1x32xf32, #tpu.memory_space<vmem>>, %arg9: memref<32x32xbf16, #tpu.memory_space<vmem>>, %arg10: memref<1x32xf32, #tpu.memory_space<vmem>>, %arg11: memref<32x32xbf16, #tpu.memory_space<vmem>>, %arg12: memref<1x32xf32, #tpu.memory_space<vmem>>, %arg13: memref<32x32xbf16, #tpu.memory_space<vmem>>, %arg14: memref<1x32xf32, #tpu.memory_space<vmem>>, %arg15: memref<32x2xbf16, #tpu.memory_space<vmem>>, %arg16: memref<16x2xf32, #tpu.memory_space<vmem>>, %arg17: memref<1x18x2xf32, #tpu.memory_space<vmem>>, %arg18: memref<1x1x32xf32, #tpu.memory_space<vmem>>) attributes {dimension_semantics = [#tpu.dimension_semantics<parallel>], iteration_bounds = array<i64: 2>, scalar_prefetch = 0 : i64, scratch_operands = 0 : i64, tpu.core_type = #tpu.core_type<tc>, window_params = [{transform_indices = @transform_0, window_bounds = array<i64: 1, 8, 16>}, {transform_indices = @transform_1, window_bounds = array<i64: 1, 8, 16>}, {transform_indices = @transform_2, window_bounds = array<i64: 1, 4, 256>}, {transform_indices = @transform_3, window_bounds = array<i64: 1, 16, 256>}, {pipeline_mode = #tpu.pipeline_mode<synchronous>, transform_indices = @transform_4, window_bounds = array<i64: 16, 32>}, {pipeline_mode = #tpu.pipeline_mode<synchronous>, transform_indices = @transform_5, window_bounds = array<i64: 1, 32>}, {pipeline_mode = #tpu.pipeline_mode<synchronous>, transform_indices = @transform_6, window_bounds = array<i64: 256, 32>}, {pipeline_mode = #tpu.pipeline_mode<synchronous>, transform_indices = @transform_7, window_bounds = array<i64: 1, 32>}, {pipeline_mode = #tpu.pipeline_mode<synchronous>, transform_indices = @transform_8, window_bounds = array<i64: 32, 32>}, {pipeline_mode = #tpu.pipeline_mode<synchronous>, transform_indices = @transform_9, window_bounds = array<i64: 1, 32>}, {pipeline_mode = #tpu.pipeline_mode<synchronous>, transform_indices = @transform_10, window_bounds = array<i64: 32, 32>}, {pipeline_mode = #tpu.pipeline_mode<synchronous>, transform_indices = @transform_11, window_bounds = array<i64: 1, 32>}, {pipeline_mode = #tpu.pipeline_mode<synchronous>, transform_indices = @transform_12, window_bounds = array<i64: 32, 32>}, {pipeline_mode = #tpu.pipeline_mode<synchronous>, transform_indices = @transform_13, window_bounds = array<i64: 1, 32>}, {pipeline_mode = #tpu.pipeline_mode<synchronous>, transform_indices = @transform_14, window_bounds = array<i64: 32, 2>}, {pipeline_mode = #tpu.pipeline_mode<synchronous>, transform_indices = @transform_15, window_bounds = array<i64: 16, 2>}, {transform_indices = @transform_16, window_bounds = array<i64: 1, 18, 2>}, {transform_indices = @transform_17, window_bounds = array<i64: 1, 1, 32>}]} {
    %c0 = arith.constant 0 : index
    %c0_0 = arith.constant 0 : index
    %c0_1 = arith.constant 0 : index
    %0 = vector.load %arg1[%c0, %c0_0, %c0_1] : memref<1x8x16xf32, #tpu.memory_space<vmem>>, vector<1x8x16xf32>
    %1 = vector.shape_cast %0 : vector<1x8x16xf32> to vector<8x16xf32>
    %2 = arith.truncf %1 : vector<8x16xf32> to vector<8x16xbf16>
    %c0_2 = arith.constant 0 : index
    %c0_3 = arith.constant 0 : index
    %3 = vector.load %arg5[%c0_2, %c0_3] : memref<16x32xbf16, #tpu.memory_space<vmem>>, vector<16x32xbf16>
    %cst = arith.constant dense<0.000000e+00> : vector<8x32xf32>
    %4 = tpu.matmul %2, %3, %cst {dimension_numbers = #tpu.dot_dimension_numbers<[1], [0], [0], [1], [0, 0, 1, 1], [], []>} : vector<8x16xbf16>, vector<16x32xbf16>, vector<8x32xf32> -> vector<8x32xf32>
    %c0_4 = arith.constant 0 : index
    %c0_5 = arith.constant 0 : index
    %5 = vector.load %arg6[%c0_4, %c0_5] : memref<1x32xf32, #tpu.memory_space<vmem>>, vector<1x32xf32>
    %6 = vector.broadcast %5 : vector<1x32xf32> to vector<8x32xf32>
    %7 = arith.addf %4, %6 : vector<8x32xf32>
    %cst_6 = arith.constant 0.000000e+00 : f32
    %8 = vector.broadcast %cst_6 : f32 to vector<8x32xf32>
    %9 = arith.maximumf %7, %8 : vector<8x32xf32>
    %cst_7 = arith.constant dense<0.000000e+00> : vector<32xf32>
    %10 = vector.multi_reduction <add>, %9, %cst_7 [0] : vector<8x32xf32> to vector<32xf32>
    %11 = vector.shape_cast %10 : vector<32xf32> to vector<1x32xf32>
    %cst_8 = arith.constant 8.000000e+00 : f32
    %12 = vector.broadcast %cst_8 : f32 to vector<1x32xf32>
    %13 = arith.divf %11, %12 : vector<1x32xf32>
    %c0_9 = arith.constant 0 : index
    %c0_10 = arith.constant 0 : index
    %c0_11 = arith.constant 0 : index
    %14 = vector.load %arg2[%c0_9, %c0_10, %c0_11] : memref<1x8x16xf32, #tpu.memory_space<vmem>>, vector<1x8x16xf32>
    %15 = vector.shape_cast %14 : vector<1x8x16xf32> to vector<8x16xf32>
    %16 = arith.truncf %15 : vector<8x16xf32> to vector<8x16xbf16>
    %c0_12 = arith.constant 0 : index
    %c0_13 = arith.constant 0 : index
    %17 = vector.load %arg5[%c0_12, %c0_13] : memref<16x32xbf16, #tpu.memory_space<vmem>>, vector<16x32xbf16>
    %cst_14 = arith.constant dense<0.000000e+00> : vector<8x32xf32>
    %18 = tpu.matmul %16, %17, %cst_14 {dimension_numbers = #tpu.dot_dimension_numbers<[1], [0], [0], [1], [0, 0, 1, 1], [], []>} : vector<8x16xbf16>, vector<16x32xbf16>, vector<8x32xf32> -> vector<8x32xf32>
    %c0_15 = arith.constant 0 : index
    %c0_16 = arith.constant 0 : index
    %19 = vector.load %arg6[%c0_15, %c0_16] : memref<1x32xf32, #tpu.memory_space<vmem>>, vector<1x32xf32>
    %20 = vector.broadcast %19 : vector<1x32xf32> to vector<8x32xf32>
    %21 = arith.addf %18, %20 : vector<8x32xf32>
    %cst_17 = arith.constant 0.000000e+00 : f32
    %22 = vector.broadcast %cst_17 : f32 to vector<8x32xf32>
    %23 = arith.maximumf %21, %22 : vector<8x32xf32>
    %cst_18 = arith.constant dense<0.000000e+00> : vector<32xf32>
    %24 = vector.multi_reduction <add>, %23, %cst_18 [0] : vector<8x32xf32> to vector<32xf32>
    %25 = vector.shape_cast %24 : vector<32xf32> to vector<1x32xf32>
    %cst_19 = arith.constant 8.000000e+00 : f32
    %26 = vector.broadcast %cst_19 : f32 to vector<1x32xf32>
    %27 = arith.divf %25, %26 : vector<1x32xf32>
    %c0_20 = arith.constant 0 : index
    %c0_21 = arith.constant 0 : index
    %c0_22 = arith.constant 0 : index
    %28 = vector.load %arg18[%c0_20, %c0_21, %c0_22] : memref<1x1x32xf32, #tpu.memory_space<vmem>>, vector<1x1x32xf32>
    %29 = vector.shape_cast %28 : vector<1x1x32xf32> to vector<1x32xf32>
    %30 = vector.shape_cast %13 : vector<1x32xf32> to vector<1x1x32xf32>
    tpu.vector_store %arg18[%c0_20, %c0_21, %c0_22], %30 {strides = array<i32>} : memref<1x1x32xf32, #tpu.memory_space<vmem>>, vector<1x1x32xf32>,
    %c0_23 = arith.constant 0 : index
    %c0_24 = arith.constant 0 : index
    %c0_25 = arith.constant 0 : index
    %31 = vector.load %arg3[%c0_23, %c0_24, %c0_25] : memref<1x4x256xf32, #tpu.memory_space<vmem>>, vector<1x4x256xf32>
    %32 = vector.shape_cast %31 : vector<1x4x256xf32> to vector<4x256xf32>
    %33 = arith.truncf %32 : vector<4x256xf32> to vector<4x256xbf16>
    %c0_26 = arith.constant 0 : index
    %c0_27 = arith.constant 0 : index
    %34 = vector.load %arg7[%c0_26, %c0_27] : memref<256x32xbf16, #tpu.memory_space<vmem>>, vector<256x32xbf16>
    %cst_28 = arith.constant dense<0.000000e+00> : vector<4x32xf32>
    %35 = tpu.matmul %33, %34, %cst_28 {dimension_numbers = #tpu.dot_dimension_numbers<[1], [0], [0], [1], [0, 0, 1, 1], [], []>} : vector<4x256xbf16>, vector<256x32xbf16>, vector<4x32xf32> -> vector<4x32xf32>
    %c0_29 = arith.constant 0 : index
    %c0_30 = arith.constant 0 : index
    %36 = vector.load %arg8[%c0_29, %c0_30] : memref<1x32xf32, #tpu.memory_space<vmem>>, vector<1x32xf32>
    %37 = vector.broadcast %36 : vector<1x32xf32> to vector<4x32xf32>
    %38 = arith.addf %35, %37 : vector<4x32xf32>
    %39 = vector.broadcast %13 : vector<1x32xf32> to vector<4x32xf32>
    %40 = arith.addf %38, %39 : vector<4x32xf32>
    %41 = arith.truncf %40 : vector<4x32xf32> to vector<4x32xbf16>
    %c0_31 = arith.constant 0 : index
    %c0_32 = arith.constant 0 : index
    %42 = vector.load %arg9[%c0_31, %c0_32] : memref<32x32xbf16, #tpu.memory_space<vmem>>, vector<32x32xbf16>
    %cst_33 = arith.constant dense<0.000000e+00> : vector<4x32xf32>
    %43 = tpu.matmul %41, %42, %cst_33 {dimension_numbers = #tpu.dot_dimension_numbers<[1], [0], [0], [1], [0, 0, 1, 1], [], []>} : vector<4x32xbf16>, vector<32x32xbf16>, vector<4x32xf32> -> vector<4x32xf32>
    %c0_34 = arith.constant 0 : index
    %c0_35 = arith.constant 0 : index
    %44 = vector.load %arg10[%c0_34, %c0_35] : memref<1x32xf32, #tpu.memory_space<vmem>>, vector<1x32xf32>
    %45 = vector.broadcast %44 : vector<1x32xf32> to vector<4x32xf32>
    %46 = arith.addf %43, %45 : vector<4x32xf32>
    %47 = arith.mulf %46, %46 : vector<4x32xf32>
    %48 = arith.mulf %46, %47 : vector<4x32xf32>
    %cst_36 = arith.constant 4.471500e-02 : f32
    %49 = vector.broadcast %cst_36 : f32 to vector<4x32xf32>
    %50 = arith.mulf %49, %48 : vector<4x32xf32>
    %51 = arith.addf %46, %50 : vector<4x32xf32>
    %cst_37 = arith.constant 0.797884583 : f32
    %52 = vector.broadcast %cst_37 : f32 to vector<4x32xf32>
    %53 = arith.mulf %52, %51 : vector<4x32xf32>
    %54 = math.tanh %53 : vector<4x32xf32>
    %cst_38 = arith.constant 1.000000e+00 : f32
    %55 = vector.broadcast %cst_38 : f32 to vector<4x32xf32>
    %56 = arith.addf %55, %54 : vector<4x32xf32>
    %cst_39 = arith.constant 5.000000e-01 : f32
    %57 = vector.broadcast %cst_39 : f32 to vector<4x32xf32>
    %58 = arith.mulf %57, %56 : vector<4x32xf32>
    %59 = arith.mulf %46, %58 : vector<4x32xf32>
    %60 = arith.truncf %59 : vector<4x32xf32> to vector<4x32xbf16>
    %c0_40 = arith.constant 0 : index
    %c0_41 = arith.constant 0 : index
    %61 = vector.load %arg11[%c0_40, %c0_41] : memref<32x32xbf16, #tpu.memory_space<vmem>>, vector<32x32xbf16>
    %cst_42 = arith.constant dense<0.000000e+00> : vector<4x32xf32>
    %62 = tpu.matmul %60, %61, %cst_42 {dimension_numbers = #tpu.dot_dimension_numbers<[1], [0], [0], [1], [0, 0, 1, 1], [], []>} : vector<4x32xbf16>, vector<32x32xbf16>, vector<4x32xf32> -> vector<4x32xf32>
    %c0_43 = arith.constant 0 : index
    %c0_44 = arith.constant 0 : index
    %63 = vector.load %arg12[%c0_43, %c0_44] : memref<1x32xf32, #tpu.memory_space<vmem>>, vector<1x32xf32>
    %64 = vector.broadcast %63 : vector<1x32xf32> to vector<4x32xf32>
    %65 = arith.addf %62, %64 : vector<4x32xf32>
    %66 = arith.addf %40, %65 : vector<4x32xf32>
    %c0_45 = arith.constant 0 : index
    %c0_46 = arith.constant 0 : index
    %c0_47 = arith.constant 0 : index
    %67 = vector.load %arg4[%c0_45, %c0_46, %c0_47] : memref<1x16x256xf32, #tpu.memory_space<vmem>>, vector<1x16x256xf32>
    %68 = vector.shape_cast %67 : vector<1x16x256xf32> to vector<16x256xf32>
    %69 = arith.truncf %68 : vector<16x256xf32> to vector<16x256xbf16>
    %c0_48 = arith.constant 0 : index
    %c0_49 = arith.constant 0 : index
    %70 = vector.load %arg7[%c0_48, %c0_49] : memref<256x32xbf16, #tpu.memory_space<vmem>>, vector<256x32xbf16>
    %cst_50 = arith.constant dense<0.000000e+00> : vector<16x32xf32>
    %71 = tpu.matmul %69, %70, %cst_50 {dimension_numbers = #tpu.dot_dimension_numbers<[1], [0], [0], [1], [0, 0, 1, 1], [], []>} : vector<16x256xbf16>, vector<256x32xbf16>, vector<16x32xf32> -> vector<16x32xf32>
    %c0_51 = arith.constant 0 : index
    %c0_52 = arith.constant 0 : index
    %72 = vector.load %arg8[%c0_51, %c0_52] : memref<1x32xf32, #tpu.memory_space<vmem>>, vector<1x32xf32>
    %73 = vector.broadcast %72 : vector<1x32xf32> to vector<16x32xf32>
    %74 = arith.addf %71, %73 : vector<16x32xf32>
    %75 = vector.broadcast %27 : vector<1x32xf32> to vector<16x32xf32>
    %76 = arith.addf %74, %75 : vector<16x32xf32>
    %77 = arith.truncf %76 : vector<16x32xf32> to vector<16x32xbf16>
    %c0_53 = arith.constant 0 : index
    %c0_54 = arith.constant 0 : index
    %78 = vector.load %arg9[%c0_53, %c0_54] : memref<32x32xbf16, #tpu.memory_space<vmem>>, vector<32x32xbf16>
    %cst_55 = arith.constant dense<0.000000e+00> : vector<16x32xf32>
    %79 = tpu.matmul %77, %78, %cst_55 {dimension_numbers = #tpu.dot_dimension_numbers<[1], [0], [0], [1], [0, 0, 1, 1], [], []>} : vector<16x32xbf16>, vector<32x32xbf16>, vector<16x32xf32> -> vector<16x32xf32>
    %c0_56 = arith.constant 0 : index
    %c0_57 = arith.constant 0 : index
    %80 = vector.load %arg10[%c0_56, %c0_57] : memref<1x32xf32, #tpu.memory_space<vmem>>, vector<1x32xf32>
    %81 = vector.broadcast %80 : vector<1x32xf32> to vector<16x32xf32>
    %82 = arith.addf %79, %81 : vector<16x32xf32>
    %83 = arith.mulf %82, %82 : vector<16x32xf32>
    %84 = arith.mulf %82, %83 : vector<16x32xf32>
    %cst_58 = arith.constant 4.471500e-02 : f32
    %85 = vector.broadcast %cst_58 : f32 to vector<16x32xf32>
    %86 = arith.mulf %85, %84 : vector<16x32xf32>
    %87 = arith.addf %82, %86 : vector<16x32xf32>
    %cst_59 = arith.constant 0.797884583 : f32
    %88 = vector.broadcast %cst_59 : f32 to vector<16x32xf32>
    %89 = arith.mulf %88, %87 : vector<16x32xf32>
    %90 = math.tanh %89 : vector<16x32xf32>
    %cst_60 = arith.constant 1.000000e+00 : f32
    %91 = vector.broadcast %cst_60 : f32 to vector<16x32xf32>
    %92 = arith.addf %91, %90 : vector<16x32xf32>
    %cst_61 = arith.constant 5.000000e-01 : f32
    %93 = vector.broadcast %cst_61 : f32 to vector<16x32xf32>
    %94 = arith.mulf %93, %92 : vector<16x32xf32>
    %95 = arith.mulf %82, %94 : vector<16x32xf32>
    %96 = arith.truncf %95 : vector<16x32xf32> to vector<16x32xbf16>
    %c0_62 = arith.constant 0 : index
    %c0_63 = arith.constant 0 : index
    %97 = vector.load %arg11[%c0_62, %c0_63] : memref<32x32xbf16, #tpu.memory_space<vmem>>, vector<32x32xbf16>
    %cst_64 = arith.constant dense<0.000000e+00> : vector<16x32xf32>
    %98 = tpu.matmul %96, %97, %cst_64 {dimension_numbers = #tpu.dot_dimension_numbers<[1], [0], [0], [1], [0, 0, 1, 1], [], []>} : vector<16x32xbf16>, vector<32x32xbf16>, vector<16x32xf32> -> vector<16x32xf32>
    %c0_65 = arith.constant 0 : index
    %c0_66 = arith.constant 0 : index
    %99 = vector.load %arg12[%c0_65, %c0_66] : memref<1x32xf32, #tpu.memory_space<vmem>>, vector<1x32xf32>
    %100 = vector.broadcast %99 : vector<1x32xf32> to vector<16x32xf32>
    %101 = arith.addf %98, %100 : vector<16x32xf32>
    %102 = arith.addf %76, %101 : vector<16x32xf32>
    %cst_67 = arith.constant dense<0.000000e+00> : vector<32xf32>
    %103 = vector.multi_reduction <add>, %66, %cst_67 [0] : vector<4x32xf32> to vector<32xf32>
    %104 = vector.shape_cast %103 : vector<32xf32> to vector<1x32xf32>
    %cst_68 = arith.constant dense<0.000000e+00> : vector<32xf32>
    %105 = vector.multi_reduction <add>, %102, %cst_68 [0] : vector<16x32xf32> to vector<32xf32>
    %106 = vector.shape_cast %105 : vector<32xf32> to vector<1x32xf32>
    %107 = arith.addf %104, %106 : vector<1x32xf32>
    %cst_69 = arith.constant 5.000000e-02 : f32
    %108 = vector.broadcast %cst_69 : f32 to vector<1x32xf32>
    %109 = arith.mulf %107, %108 : vector<1x32xf32>
    %110 = vector.broadcast %109 : vector<1x32xf32> to vector<16x32xf32>
    %111 = arith.addf %102, %110 : vector<16x32xf32>
    %112 = arith.truncf %111 : vector<16x32xf32> to vector<16x32xbf16>
    %c0_70 = arith.constant 0 : index
    %c0_71 = arith.constant 0 : index
    %113 = vector.load %arg13[%c0_70, %c0_71] : memref<32x32xbf16, #tpu.memory_space<vmem>>, vector<32x32xbf16>
    %cst_72 = arith.constant dense<0.000000e+00> : vector<16x32xf32>
    %114 = tpu.matmul %112, %113, %cst_72 {dimension_numbers = #tpu.dot_dimension_numbers<[1], [0], [0], [1], [0, 0, 1, 1], [], []>} : vector<16x32xbf16>, vector<32x32xbf16>, vector<16x32xf32> -> vector<16x32xf32>
    %c0_73 = arith.constant 0 : index
    %c0_74 = arith.constant 0 : index
    %115 = vector.load %arg14[%c0_73, %c0_74] : memref<1x32xf32, #tpu.memory_space<vmem>>, vector<1x32xf32>
    %116 = vector.broadcast %115 : vector<1x32xf32> to vector<16x32xf32>
    %117 = arith.addf %114, %116 : vector<16x32xf32>
    %cst_75 = arith.constant 0.000000e+00 : f32
    %118 = vector.broadcast %cst_75 : f32 to vector<16x32xf32>
    %119 = arith.maximumf %117, %118 : vector<16x32xf32>
    %120 = arith.truncf %119 : vector<16x32xf32> to vector<16x32xbf16>
    %c0_76 = arith.constant 0 : index
    %c0_77 = arith.constant 0 : index
    %121 = vector.load %arg15[%c0_76, %c0_77] : memref<32x2xbf16, #tpu.memory_space<vmem>>, vector<32x2xbf16>
    %cst_78 = arith.constant dense<0.000000e+00> : vector<16x2xf32>
    %122 = tpu.matmul %120, %121, %cst_78 {dimension_numbers = #tpu.dot_dimension_numbers<[1], [0], [0], [1], [0, 0, 1, 1], [], []>} : vector<16x32xbf16>, vector<32x2xbf16>, vector<16x2xf32> -> vector<16x2xf32>
    %cst_79 = arith.constant dense<0xFF800000> : vector<2xf32>
    %123 = vector.multi_reduction <maximumf>, %122, %cst_79 [0] : vector<16x2xf32> to vector<2xf32>
    %124 = vector.shape_cast %123 : vector<2xf32> to vector<1x2xf32>
    %125 = vector.broadcast %124 : vector<1x2xf32> to vector<16x2xf32>
    %126 = arith.subf %122, %125 : vector<16x2xf32>
    %127 = math.exp %126 : vector<16x2xf32>
    %cst_80 = arith.constant dense<0.000000e+00> : vector<2xf32>
    %128 = vector.multi_reduction <add>, %127, %cst_80 [0] : vector<16x2xf32> to vector<2xf32>
    %129 = vector.shape_cast %128 : vector<2xf32> to vector<1x2xf32>
    %130 = tpu.reciprocal %129 {approx = true} : vector<1x2xf32> -> vector<1x2xf32>
    %131 = vector.broadcast %130 : vector<1x2xf32> to vector<16x2xf32>
    %132 = arith.mulf %127, %131 : vector<16x2xf32>
    %c0_81 = arith.constant 0 : index
    %c0_82 = arith.constant 0 : index
    %133 = vector.load %arg16[%c0_81, %c0_82] : memref<16x2xf32, #tpu.memory_space<vmem>>, vector<16x2xf32>
    %134 = vector.extract_strided_slice %133 {offsets = [0, 0], sizes = [16, 1], strides = [1, 1]} : vector<16x2xf32> to vector<16x1xf32>
    %135 = vector.broadcast %134 : vector<16x1xf32> to vector<16x2xf32>
    %136 = arith.mulf %132, %135 : vector<16x2xf32>
    %cst_83 = arith.constant dense<0.000000e+00> : vector<2xf32>
    %137 = vector.multi_reduction <add>, %136, %cst_83 [0] : vector<16x2xf32> to vector<2xf32>
    %138 = vector.shape_cast %137 : vector<2xf32> to vector<1x2xf32>
    %139 = vector.extract_strided_slice %133 {offsets = [0, 1], sizes = [16, 1], strides = [1, 1]} : vector<16x2xf32> to vector<16x1xf32>
    %140 = vector.broadcast %139 : vector<16x1xf32> to vector<16x2xf32>
    %141 = arith.mulf %132, %140 : vector<16x2xf32>
    %cst_84 = arith.constant dense<0.000000e+00> : vector<2xf32>
    %142 = vector.multi_reduction <add>, %141, %cst_84 [0] : vector<16x2xf32> to vector<2xf32>
    %143 = vector.shape_cast %142 : vector<2xf32> to vector<1x2xf32>
    %c0_85 = arith.constant 0 : index
    %c0_86 = arith.constant 0 : index
    %c0_87 = arith.constant 0 : index
    %144 = vector.load %arg17[%c0_85, %c0_86, %c0_87] : memref<1x18x2xf32, #tpu.memory_space<vmem>>, vector<1x16x2xf32>
    %145 = vector.shape_cast %144 : vector<1x16x2xf32> to vector<16x2xf32>
    %146 = vector.shape_cast %132 : vector<16x2xf32> to vector<1x16x2xf32>
    tpu.vector_store %arg17[%c0_85, %c0_86, %c0_87], %146 {strides = array<i32>} : memref<1x18x2xf32, #tpu.memory_space<vmem>>, vector<1x16x2xf32>,
    %c0_88 = arith.constant 0 : index
    %c16 = arith.constant 16 : index
    %c0_89 = arith.constant 0 : index
    %147 = vector.load %arg17[%c0_88, %c16, %c0_89] : memref<1x18x2xf32, #tpu.memory_space<vmem>>, vector<1x1x2xf32>
    %148 = vector.shape_cast %147 : vector<1x1x2xf32> to vector<1x2xf32>
    %149 = vector.shape_cast %138 : vector<1x2xf32> to vector<1x1x2xf32>
    tpu.vector_store %arg17[%c0_88, %c16, %c0_89], %149 {strides = array<i32>} : memref<1x18x2xf32, #tpu.memory_space<vmem>>, vector<1x1x2xf32>,
    %c0_90 = arith.constant 0 : index
    %c17 = arith.constant 17 : index
    %c0_91 = arith.constant 0 : index
    %150 = vector.load %arg17[%c0_90, %c17, %c0_91] : memref<1x18x2xf32, #tpu.memory_space<vmem>>, vector<1x1x2xf32>
    %151 = vector.shape_cast %150 : vector<1x1x2xf32> to vector<1x2xf32>
    %152 = vector.shape_cast %143 : vector<1x2xf32> to vector<1x1x2xf32>
    tpu.vector_store %arg17[%c0_90, %c17, %c0_91], %152 {strides = array<i32>} : memref<1x18x2xf32, #tpu.memory_space<vmem>>, vector<1x1x2xf32>,
    return
  }
  func.func @transform_0(%arg0: i32) -> (i32, i32, i32) {
    %c0_i32 = arith.constant 0 : i32
    %c0_i32_0 = arith.constant 0 : i32
    %c0_i32_1 = arith.constant 0 : i32
    return %arg0, %c0_i32, %c0_i32_0 : i32, i32, i32
  }
  func.func @transform_1(%arg0: i32) -> (i32, i32, i32) {
    %c0_i32 = arith.constant 0 : i32
    %c0_i32_0 = arith.constant 0 : i32
    %c0_i32_1 = arith.constant 0 : i32
    return %arg0, %c0_i32, %c0_i32_0 : i32, i32, i32
  }
  func.func @transform_2(%arg0: i32) -> (i32, i32, i32) {
    %c0_i32 = arith.constant 0 : i32
    %c0_i32_0 = arith.constant 0 : i32
    %c0_i32_1 = arith.constant 0 : i32
    return %arg0, %c0_i32, %c0_i32_0 : i32, i32, i32
  }
  func.func @transform_3(%arg0: i32) -> (i32, i32, i32) {
    %c0_i32 = arith.constant 0 : i32
    %c0_i32_0 = arith.constant 0 : i32
    %c0_i32_1 = arith.constant 0 : i32
    return %arg0, %c0_i32, %c0_i32_0 : i32, i32, i32
  }
  func.func @transform_4(%arg0: i32) -> (i32, i32) {
    %c0_i32 = arith.constant 0 : i32
    %c0_i32_0 = arith.constant 0 : i32
    %c0_i32_1 = arith.constant 0 : i32
    return %c0_i32, %c0_i32_0 : i32, i32
  }
  func.func @transform_5(%arg0: i32) -> (i32, i32) {
    %c0_i32 = arith.constant 0 : i32
    %c0_i32_0 = arith.constant 0 : i32
    %c0_i32_1 = arith.constant 0 : i32
    return %c0_i32, %c0_i32_0 : i32, i32
  }
  func.func @transform_6(%arg0: i32) -> (i32, i32) {
    %c0_i32 = arith.constant 0 : i32
    %c0_i32_0 = arith.constant 0 : i32
    %c0_i32_1 = arith.constant 0 : i32
    return %c0_i32, %c0_i32_0 : i32, i32
  }
  func.func @transform_7(%arg0: i32) -> (i32, i32) {
    %c0_i32 = arith.constant 0 : i32
    %c0_i32_0 = arith.constant 0 : i32
    %c0_i32_1 = arith.constant 0 : i32
    return %c0_i32, %c0_i32_0 : i32, i32
  }
  func.func @transform_8(%arg0: i32) -> (i32, i32) {
    %c0_i32 = arith.constant 0 : i32
    %c0_i32_0 = arith.constant 0 : i32
    %c0_i32_1 = arith.constant 0 : i32
    return %c0_i32, %c0_i32_0 : i32, i32
  }
  func.func @transform_9(%arg0: i32) -> (i32, i32) {
    %c0_i32 = arith.constant 0 : i32
    %c0_i32_0 = arith.constant 0 : i32
    %c0_i32_1 = arith.constant 0 : i32
    return %c0_i32, %c0_i32_0 : i32, i32
  }
  func.func @transform_10(%arg0: i32) -> (i32, i32) {
    %c0_i32 = arith.constant 0 : i32
    %c0_i32_0 = arith.constant 0 : i32
    %c0_i32_1 = arith.constant 0 : i32
    return %c0_i32, %c0_i32_0 : i32, i32
  }
  func.func @transform_11(%arg0: i32) -> (i32, i32) {
    %c0_i32 = arith.constant 0 : i32
    %c0_i32_0 = arith.constant 0 : i32
    %c0_i32_1 = arith.constant 0 : i32
    return %c0_i32, %c0_i32_0 : i32, i32
  }
  func.func @transform_12(%arg0: i32) -> (i32, i32) {
    %c0_i32 = arith.constant 0 : i32
    %c0_i32_0 = arith.constant 0 : i32
    %c0_i32_1 = arith.constant 0 : i32
    return %c0_i32, %c0_i32_0 : i32, i32
  }
  func.func @transform_13(%arg0: i32) -> (i32, i32) {
    %c0_i32 = arith.constant 0 : i32
    %c0_i32_0 = arith.constant 0 : i32
    %c0_i32_1 = arith.constant 0 : i32
    return %c0_i32, %c0_i32_0 : i32, i32
  }
  func.func @transform_14(%arg0: i32) -> (i32, i32) {
    %c0_i32 = arith.constant 0 : i32
    %c0_i32_0 = arith.constant 0 : i32
    %c0_i32_1 = arith.constant 0 : i32
    return %c0_i32, %c0_i32_0 : i32, i32
  }
  func.func @transform_15(%arg0: i32) -> (i32, i32) {
    %c0_i32 = arith.constant 0 : i32
    %c0_i32_0 = arith.constant 0 : i32
    %c0_i32_1 = arith.constant 0 : i32
    return %c0_i32, %c0_i32_0 : i32, i32
  }
  func.func @transform_16(%arg0: i32) -> (i32, i32, i32) {
    %c0_i32 = arith.constant 0 : i32
    %c0_i32_0 = arith.constant 0 : i32
    %c0_i32_1 = arith.constant 0 : i32
    return %arg0, %c0_i32, %c0_i32_0 : i32, i32, i32
  }
  func.func @transform_17(%arg0: i32) -> (i32, i32, i32) {
    %c0_i32 = arith.constant 0 : i32
    %c0_i32_0 = arith.constant 0 : i32
    %c0_i32_1 = arith.constant 0 : i32
    return %arg0, %c0_i32, %c0_i32_0 : i32, i32, i32
  }
}

</mosaic_0001>

<llo_original>
// kernel: tpu_custom_call.1
$region0: #{tpu_custom_call.1}
  #allocation0 [shape = 'u32[]', space=smem, size = 0x4, offset = 0x4, fixed_abs, tag = 'smem constant byte address 0x4 - core index']
  #allocation1 [shape = 'u32[144,128]{1,0:T(1,128)}', space=vmem, size = 0x12000, scoped, tag = 'internal scratch']
  %s0 = inlined_call_operand.vmem [shape: f32[2,8,16], index: 0, kind: input, shape index: {}]
  %s1 = inlined_call_operand.vmem [shape: f32[2,8,16], index: 1, kind: input, shape index: {}]
  %s2 = inlined_call_operand.vmem [shape: f32[2,4,256], index: 2, kind: input, shape index: {}]
  %s3 = inlined_call_operand.vmem [shape: f32[2,16,256], index: 3, kind: input, shape index: {}]
  %s4 = inlined_call_operand.vmem [shape: bf16[16,32], index: 4, kind: input, shape index: {}]
  %s5 = inlined_call_operand.vmem [shape: f32[1,32], index: 5, kind: input, shape index: {}]
  %s6 = inlined_call_operand.vmem [shape: bf16[256,32], index: 6, kind: input, shape index: {}]
  %s7 = inlined_call_operand.vmem [shape: f32[1,32], index: 7, kind: input, shape index: {}]
  %s8 = inlined_call_operand.vmem [shape: bf16[32,32], index: 8, kind: input, shape index: {}]
  %s9 = inlined_call_operand.vmem [shape: f32[1,32], index: 9, kind: input, shape index: {}]
  %s10 = inlined_call_operand.vmem [shape: bf16[32,32], index: 10, kind: input, shape index: {}]
  %s11 = inlined_call_operand.vmem [shape: f32[1,32], index: 11, kind: input, shape index: {}]
  %s12 = inlined_call_operand.vmem [shape: bf16[32,32], index: 12, kind: input, shape index: {}]
  %s13 = inlined_call_operand.vmem [shape: f32[1,32], index: 13, kind: input, shape index: {}]
  %s14 = inlined_call_operand.vmem [shape: bf16[32,2], index: 14, kind: input, shape index: {}]
  %s15 = inlined_call_operand.vmem [shape: f32[16,2], index: 15, kind: input, shape index: {}]
  %s16 = inlined_call_operand.vmem [shape: f32[2,18,2], index: 16, kind: output, shape index: {0}]
  %s17 = inlined_call_operand.hbm [shape: f32[2,1,32], index: 17, kind: output, shape index: {1}]
  %18 = xla_tuple %s16, %s17
  %s19 = sld [smem:[#allocation0]]
  $region105: #{tpu_custom_call.1} parent=0
    _
  %s21 = ssub.s32 1, %s19
  %s22 = scalar_select 0, %s21, %s19
  $region1: #{tpu_custom_call.1} parent=0
    #allocation2 [shape = 'u8[1024]{0}', space=vmem, size = 0x400, scoped, tag = 'output window, operand 1']
    #allocation3 [shape = 's32[2]{0}', space=sflag, size = 0x8, scoped, tag = 'scoped memory for tpu_custom_call.1']
    %23 = vsyncpa [#allocation3], 0
    %s24 = scalar_lea.sflag [#allocation3], 1
    %25 = vsyncpa %s24, 0
    loop: start=0, step=1, limit=4
    $region2: #{tpu_custom_call.1} parent=1 // loop_pre_header
      _
    $region3: #{tpu_custom_call.1} parent=1 // loop_header
      %s27 = sphi 0, %s31
      %p28 = scmp.ge.s32.totalorder %s27, 4
      %s37 = sphi 0, %s39
      %s40 = sphi 0, %s37
      %s41 = sphi 0, %s40
      %s57 = sphi 0, %s41
      %s63 = sphi 0, %s65
      %s66 = sphi 0, %s63
      %s67 = sphi 0, %s66
      %s83 = sphi 0, %s67
      %s89 = sphi 0, %s91
      %s92 = sphi 0, %s89
      %s93 = sphi 0, %s92
      %s109 = sphi 0, %s93
      %s115 = sphi 0, %s117
      %s118 = sphi 0, %s115
      %s119 = sphi 0, %s118
      %s135 = sphi 0, %s119
      %s139 = sphi 0, %s139
      %s141 = sphi 0, %s139
      %s142 = sphi 0, %s141
      %s156 = sphi 0, %s142
      %s160 = sphi 0, %s160
      %s162 = sphi 0, %s160
      %s163 = sphi 0, %s162
      %s177 = sphi 0, %s163
      %s181 = sphi 0, %s181
      %s183 = sphi 0, %s181
      %s184 = sphi 0, %s183
      %s198 = sphi 0, %s184
      %s202 = sphi 0, %s202
      %s204 = sphi 0, %s202
      %s205 = sphi 0, %s204
      %s219 = sphi 0, %s205
      %s223 = sphi 0, %s223
      %s225 = sphi 0, %s223
      %s226 = sphi 0, %s225
      %s240 = sphi 0, %s226
      %s244 = sphi 0, %s244
      %s246 = sphi 0, %s244
      %s247 = sphi 0, %s246
      %s261 = sphi 0, %s247
      %s265 = sphi 0, %s265
      %s267 = sphi 0, %s265
      %s268 = sphi 0, %s267
      %s282 = sphi 0, %s268
      %s286 = sphi 0, %s286
      %s288 = sphi 0, %s286
      %s289 = sphi 0, %s288
      %s303 = sphi 0, %s289
      %s307 = sphi 0, %s307
      %s309 = sphi 0, %s307
      %s310 = sphi 0, %s309
      %s324 = sphi 0, %s310
      %s328 = sphi 0, %s328
      %s330 = sphi 0, %s328
      %s331 = sphi 0, %s330
      %s345 = sphi 0, %s331
      %s349 = sphi 0, %s349
      %s351 = sphi 0, %s349
      %s352 = sphi 0, %s351
      %s366 = sphi 0, %s352
      %s370 = sphi 0, %s370
      %s372 = sphi 0, %s370
      %s373 = sphi 0, %s372
      %s387 = sphi 0, %s373
      %s393 = sphi 0, %s395
      %s396 = sphi 0, %s393
      %s397 = sphi 0, %s396
      %s413 = sphi 0, %s397
      %s419 = sphi 0, %s421
      %s422 = sphi 0, %s419
      %s423 = sphi 0, %s422
      %s439 = sphi 0, %s423
    $region4: #{tpu_custom_call.1} parent=1 // loop_header_branch
      %30 = sbr.rel (%p28) target = $region8
    $region5: #{tpu_custom_call.1} parent=1 // loop_body
      %s32 = ssub.s32 %s27, 1
      %s33 = ssub.s32 %s27, 2
      %s34 = sadd.s32 %s27, 1
      %s35 = ssub.s32 %s27, %s34
      %p36 = scmp.eq.s32.totalorder %s35, 0
      %s38 = sadd.s32 %s37, 1
      %s39 = scalar_select %p36, %s37, %s38
      %p42 = pneg %p36
      %p43 = scmp.eq.s32.totalorder %s27, 1
      %p44 = por %p42, %p43
      %p45 = scmp.ne.s32.totalorder %s37, %s40
      %p46 = scmp.eq.s32.totalorder %s27, 0
      %p47 = por %p45, %p46
      %p48 = scmp.ne.s32.totalorder %s37, %s40
      %p49 = scmp.eq.s32.totalorder %s32, 1
      %p50 = por %p48, %p49
      %p51 = scmp.ne.s32.totalorder %s40, %s41
      %p52 = scmp.eq.s32.totalorder %s32, 0
      %p53 = por %p51, %p52
      %p54 = scmp.ne.s32.totalorder %s40, %s41
      %p55 = scmp.eq.s32.totalorder %s33, 1
      %p56 = por %p54, %p55
      %p58 = scmp.ne.s32.totalorder %s41, %s57
      %p59 = scmp.eq.s32.totalorder %s33, 0
      %p60 = por %p58, %p59
      %s61 = ssub.s32 %s27, %s34
      %p62 = scmp.eq.s32.totalorder %s61, 0
      %s64 = sadd.s32 %s63, 1
      %s65 = scalar_select %p62, %s63, %s64
      %p68 = pneg %p62
      %p69 = scmp.eq.s32.totalorder %s27, 1
      %p70 = por %p68, %p69
      %p71 = scmp.ne.s32.totalorder %s63, %s66
      %p72 = scmp.eq.s32.totalorder %s27, 0
      %p73 = por %p71, %p72
      %p74 = scmp.ne.s32.totalorder %s63, %s66
      %p75 = scmp.eq.s32.totalorder %s32, 1
      %p76 = por %p74, %p75
      %p77 = scmp.ne.s32.totalorder %s66, %s67
      %p78 = scmp.eq.s32.totalorder %s32, 0
      %p79 = por %p77, %p78
      %p80 = scmp.ne.s32.totalorder %s66, %s67
      %p81 = scmp.eq.s32.totalorder %s33, 1
      %p82 = por %p80, %p81
      %p84 = scmp.ne.s32.totalorder %s67, %s83
      %p85 = scmp.eq.s32.totalorder %s33, 0
      %p86 = por %p84, %p85
      %s87 = ssub.s32 %s27, %s34
      %p88 = scmp.eq.s32.totalorder %s87, 0
      %s90 = sadd.s32 %s89, 1
      %s91 = scalar_select %p88, %s89, %s90
      %p94 = pneg %p88
      %p95 = scmp.eq.s32.totalorder %s27, 1
      %p96 = por %p94, %p95
      %p97 = scmp.ne.s32.totalorder %s89, %s92
      %p98 = scmp.eq.s32.totalorder %s27, 0
      %p99 = por %p97, %p98
      %p100 = scmp.ne.s32.totalorder %s89, %s92
      %p101 = scmp.eq.s32.totalorder %s32, 1
      %p102 = por %p100, %p101
      %p103 = scmp.ne.s32.totalorder %s92, %s93
      %p104 = scmp.eq.s32.totalorder %s32, 0
      %p105 = por %p103, %p104
      %p106 = scmp.ne.s32.totalorder %s92, %s93
      %p107 = scmp.eq.s32.totalorder %s33, 1
      %p108 = por %p106, %p107
      %p110 = scmp.ne.s32.totalorder %s93, %s109
      %p111 = scmp.eq.s32.totalorder %s33, 0
      %p112 = por %p110, %p111
      %s113 = ssub.s32 %s27, %s34
      %p114 = scmp.eq.s32.totalorder %s113, 0
      %s116 = sadd.s32 %s115, 1
      %s117 = scalar_select %p114, %s115, %s116
      %p120 = pneg %p114
      %p121 = scmp.eq.s32.totalorder %s27, 1
      %p122 = por %p120, %p121
      %p123 = scmp.ne.s32.totalorder %s115, %s118
      %p124 = scmp.eq.s32.totalorder %s27, 0
      %p125 = por %p123, %p124
      %p126 = scmp.ne.s32.totalorder %s115, %s118
      %p127 = scmp.eq.s32.totalorder %s32, 1
      %p128 = por %p126, %p127
      %p129 = scmp.ne.s32.totalorder %s118, %s119
      %p130 = scmp.eq.s32.totalorder %s32, 0
      %p131 = por %p129, %p130
      %p132 = scmp.ne.s32.totalorder %s118, %s119
      %p133 = scmp.eq.s32.totalorder %s33, 1
      %p134 = por %p132, %p133
      %p136 = scmp.ne.s32.totalorder %s119, %s135
      %p137 = scmp.eq.s32.totalorder %s33, 0
      %p138 = por %p136, %p137
      %s140 = sadd.s32 %s139, 1
      %p143 = scmp.eq.s32.totalorder %s27, 1
      %p144 = scmp.ne.s32.totalorder %s139, %s141
      %p145 = scmp.eq.s32.totalorder %s27, 0
      %p146 = por %p144, %p145
      %p147 = scmp.ne.s32.totalorder %s139, %s141
      %p148 = scmp.eq.s32.totalorder %s32, 1
      %p149 = por %p147, %p148
      %p150 = scmp.ne.s32.totalorder %s141, %s142
      %p151 = scmp.eq.s32.totalorder %s32, 0
      %p152 = por %p150, %p151
      %p153 = scmp.ne.s32.totalorder %s141, %s142
      %p154 = scmp.eq.s32.totalorder %s33, 1
      %p155 = por %p153, %p154
      %p157 = scmp.ne.s32.totalorder %s142, %s156
      %p158 = scmp.eq.s32.totalorder %s33, 0
      %p159 = por %p157, %p158
      %s161 = sadd.s32 %s160, 1
      %p164 = scmp.eq.s32.totalorder %s27, 1
      %p165 = scmp.ne.s32.totalorder %s160, %s162
      %p166 = scmp.eq.s32.totalorder %s27, 0
      %p167 = por %p165, %p166
      %p168 = scmp.ne.s32.totalorder %s160, %s162
      %p169 = scmp.eq.s32.totalorder %s32, 1
      %p170 = por %p168, %p169
      %p171 = scmp.ne.s32.totalorder %s162, %s163
      %p172 = scmp.eq.s32.totalorder %s32, 0
      %p173 = por %p171, %p172
      %p174 = scmp.ne.s32.totalorder %s162, %s163
      %p175 = scmp.eq.s32.totalorder %s33, 1
      %p176 = por %p174, %p175
      %p178 = scmp.ne.s32.totalorder %s163, %s177
      %p179 = scmp.eq.s32.totalorder %s33, 0
      %p180 = por %p178, %p179
      %s182 = sadd.s32 %s181, 1
      %p185 = scmp.eq.s32.totalorder %s27, 1
      %p186 = scmp.ne.s32.totalorder %s181, %s183
      %p187 = scmp.eq.s32.totalorder %s27, 0
      %p188 = por %p186, %p187
      %p189 = scmp.ne.s32.totalorder %s181, %s183
      %p190 = scmp.eq.s32.totalorder %s32, 1
      %p191 = por %p189, %p190
      %p192 = scmp.ne.s32.totalorder %s183, %s184
      %p193 = scmp.eq.s32.totalorder %s32, 0
      %p194 = por %p192, %p193
      %p195 = scmp.ne.s32.totalorder %s183, %s184
      %p196 = scmp.eq.s32.totalorder %s33, 1
      %p197 = por %p195, %p196
      %p199 = scmp.ne.s32.totalorder %s184, %s198
      %p200 = scmp.eq.s32.totalorder %s33, 0
      %p201 = por %p199, %p200
      %s203 = sadd.s32 %s202, 1
      %p206 = scmp.eq.s32.totalorder %s27, 1
      %p207 = scmp.ne.s32.totalorder %s202, %s204
      %p208 = scmp.eq.s32.totalorder %s27, 0
      %p209 = por %p207, %p208
      %p210 = scmp.ne.s32.totalorder %s202, %s204
      %p211 = scmp.eq.s32.totalorder %s32, 1
      %p212 = por %p210, %p211
      %p213 = scmp.ne.s32.totalorder %s204, %s205
      %p214 = scmp.eq.s32.totalorder %s32, 0
      %p215 = por %p213, %p214
      %p216 = scmp.ne.s32.totalorder %s204, %s205
      %p217 = scmp.eq.s32.totalorder %s33, 1
      %p218 = por %p216, %p217
      %p220 = scmp.ne.s32.totalorder %s205, %s219
      %p221 = scmp.eq.s32.totalorder %s33, 0
      %p222 = por %p220, %p221
      %s224 = sadd.s32 %s223, 1
      %p227 = scmp.eq.s32.totalorder %s27, 1
      %p228 = scmp.ne.s32.totalorder %s223, %s225
      %p229 = scmp.eq.s32.totalorder %s27, 0
      %p230 = por %p228, %p229
      %p231 = scmp.ne.s32.totalorder %s223, %s225
      %p232 = scmp.eq.s32.totalorder %s32, 1
      %p233 = por %p231, %p232
      %p234 = scmp.ne.s32.totalorder %s225, %s226
      %p235 = scmp.eq.s32.totalorder %s32, 0
      %p236 = por %p234, %p235
      %p237 = scmp.ne.s32.totalorder %s225, %s226
      %p238 = scmp.eq.s32.totalorder %s33, 1
      %p239 = por %p237, %p238
      %p241 = scmp.ne.s32.totalorder %s226, %s240
      %p242 = scmp.eq.s32.totalorder %s33, 0
      %p243 = por %p241, %p242
      %s245 = sadd.s32 %s244, 1
      %p248 = scmp.eq.s32.totalorder %s27, 1
      %p249 = scmp.ne.s32.totalorder %s244, %s246
      %p250 = scmp.eq.s32.totalorder %s27, 0
      %p251 = por %p249, %p250
      %p252 = scmp.ne.s32.totalorder %s244, %s246
      %p253 = scmp.eq.s32.totalorder %s32, 1
      %p254 = por %p252, %p253
      %p255 = scmp.ne.s32.totalorder %s246, %s247
      %p256 = scmp.eq.s32.totalorder %s32, 0
      %p257 = por %p255, %p256
      %p258 = scmp.ne.s32.totalorder %s246, %s247
      %p259 = scmp.eq.s32.totalorder %s33, 1
      %p260 = por %p258, %p259
      %p262 = scmp.ne.s32.totalorder %s247, %s261
      %p263 = scmp.eq.s32.totalorder %s33, 0
      %p264 = por %p262, %p263
      %s266 = sadd.s32 %s265, 1
      %p269 = scmp.eq.s32.totalorder %s27, 1
      %p270 = scmp.ne.s32.totalorder %s265, %s267
      %p271 = scmp.eq.s32.totalorder %s27, 0
      %p272 = por %p270, %p271
      %p273 = scmp.ne.s32.totalorder %s265, %s267
      %p274 = scmp.eq.s32.totalorder %s32, 1
      %p275 = por %p273, %p274
      %p276 = scmp.ne.s32.totalorder %s267, %s268
      %p277 = scmp.eq.s32.totalorder %s32, 0
      %p278 = por %p276, %p277
      %p279 = scmp.ne.s32.totalorder %s267, %s268
      %p280 = scmp.eq.s32.totalorder %s33, 1
      %p281 = por %p279, %p280
      %p283 = scmp.ne.s32.totalorder %s268, %s282
      %p284 = scmp.eq.s32.totalorder %s33, 0
      %p285 = por %p283, %p284
      %s287 = sadd.s32 %s286, 1
      %p290 = scmp.eq.s32.totalorder %s27, 1
      %p291 = scmp.ne.s32.totalorder %s286, %s288
      %p292 = scmp.eq.s32.totalorder %s27, 0
      %p293 = por %p291, %p292
      %p294 = scmp.ne.s32.totalorder %s286, %s288
      %p295 = scmp.eq.s32.totalorder %s32, 1
      %p296 = por %p294, %p295
      %p297 = scmp.ne.s32.totalorder %s288, %s289
      %p298 = scmp.eq.s32.totalorder %s32, 0
      %p299 = por %p297, %p298
      %p300 = scmp.ne.s32.totalorder %s288, %s289
      %p301 = scmp.eq.s32.totalorder %s33, 1
      %p302 = por %p300, %p301
      %p304 = scmp.ne.s32.totalorder %s289, %s303
      %p305 = scmp.eq.s32.totalorder %s33, 0
      %p306 = por %p304, %p305
      %s308 = sadd.s32 %s307, 1
      %p311 = scmp.eq.s32.totalorder %s27, 1
      %p312 = scmp.ne.s32.totalorder %s307, %s309
      %p313 = scmp.eq.s32.totalorder %s27, 0
      %p314 = por %p312, %p313
      %p315 = scmp.ne.s32.totalorder %s307, %s309
      %p316 = scmp.eq.s32.totalorder %s32, 1
      %p317 = por %p315, %p316
      %p318 = scmp.ne.s32.totalorder %s309, %s310
      %p319 = scmp.eq.s32.totalorder %s32, 0
      %p320 = por %p318, %p319
      %p321 = scmp.ne.s32.totalorder %s309, %s310
      %p322 = scmp.eq.s32.totalorder %s33, 1
      %p323 = por %p321, %p322
      %p325 = scmp.ne.s32.totalorder %s310, %s324
      %p326 = scmp.eq.s32.totalorder %s33, 0
      %p327 = por %p325, %p326
      %s329 = sadd.s32 %s328, 1
      %p332 = scmp.eq.s32.totalorder %s27, 1
      %p333 = scmp.ne.s32.totalorder %s328, %s330
      %p334 = scmp.eq.s32.totalorder %s27, 0
      %p335 = por %p333, %p334
      %p336 = scmp.ne.s32.totalorder %s328, %s330
      %p337 = scmp.eq.s32.totalorder %s32, 1
      %p338 = por %p336, %p337
      %p339 = scmp.ne.s32.totalorder %s330, %s331
      %p340 = scmp.eq.s32.totalorder %s32, 0
      %p341 = por %p339, %p340
      %p342 = scmp.ne.s32.totalorder %s330, %s331
      %p343 = scmp.eq.s32.totalorder %s33, 1
      %p344 = por %p342, %p343
      %p346 = scmp.ne.s32.totalorder %s331, %s345
      %p347 = scmp.eq.s32.totalorder %s33, 0
      %p348 = por %p346, %p347
      %s350 = sadd.s32 %s349, 1
      %p353 = scmp.eq.s32.totalorder %s27, 1
      %p354 = scmp.ne.s32.totalorder %s349, %s351
      %p355 = scmp.eq.s32.totalorder %s27, 0
      %p356 = por %p354, %p355
      %p357 = scmp.ne.s32.totalorder %s349, %s351
      %p358 = scmp.eq.s32.totalorder %s32, 1
      %p359 = por %p357, %p358
      %p360 = scmp.ne.s32.totalorder %s351, %s352
      %p361 = scmp.eq.s32.totalorder %s32, 0
      %p362 = por %p360, %p361
      %p363 = scmp.ne.s32.totalorder %s351, %s352
      %p364 = scmp.eq.s32.totalorder %s33, 1
      %p365 = por %p363, %p364
      %p367 = scmp.ne.s32.totalorder %s352, %s366
      %p368 = scmp.eq.s32.totalorder %s33, 0
      %p369 = por %p367, %p368
      %s371 = sadd.s32 %s370, 1
      %p374 = scmp.eq.s32.totalorder %s27, 1
      %p375 = scmp.ne.s32.totalorder %s370, %s372
      %p376 = scmp.eq.s32.totalorder %s27, 0
      %p377 = por %p375, %p376
      %p378 = scmp.ne.s32.totalorder %s370, %s372
      %p379 = scmp.eq.s32.totalorder %s32, 1
      %p380 = por %p378, %p379
      %p381 = scmp.ne.s32.totalorder %s372, %s373
      %p382 = scmp.eq.s32.totalorder %s32, 0
      %p383 = por %p381, %p382
      %p384 = scmp.ne.s32.totalorder %s372, %s373
      %p385 = scmp.eq.s32.totalorder %s33, 1
      %p386 = por %p384, %p385
      %p388 = scmp.ne.s32.totalorder %s373, %s387
      %p389 = scmp.eq.s32.totalorder %s33, 0
      %p390 = por %p388, %p389
      %s391 = ssub.s32 %s27, %s34
      %p392 = scmp.eq.s32.totalorder %s391, 0
      %s394 = sadd.s32 %s393, 1
      %s395 = scalar_select %p392, %s393, %s394
      %p398 = pneg %p392
      %p399 = scmp.eq.s32.totalorder %s27, 1
      %p400 = por %p398, %p399
      %p401 = scmp.ne.s32.totalorder %s393, %s396
      %p402 = scmp.eq.s32.totalorder %s27, 0
      %p403 = por %p401, %p402
      %p404 = scmp.ne.s32.totalorder %s393, %s396
      %p405 = scmp.eq.s32.totalorder %s32, 1
      %p406 = por %p404, %p405
      %p407 = scmp.ne.s32.totalorder %s396, %s397
      %p408 = scmp.eq.s32.totalorder %s32, 0
      %p409 = por %p407, %p408
      %p410 = scmp.ne.s32.totalorder %s396, %s397
      %p411 = scmp.eq.s32.totalorder %s33, 1
      %p412 = por %p410, %p411
      %p414 = scmp.ne.s32.totalorder %s397, %s413
      %p415 = scmp.eq.s32.totalorder %s33, 0
      %p416 = por %p414, %p415
      %s417 = ssub.s32 %s27, %s34
      %p418 = scmp.eq.s32.totalorder %s417, 0
      %s420 = sadd.s32 %s419, 1
      %s421 = scalar_select %p418, %s419, %s420
      %p424 = pneg %p418
      %p425 = scmp.eq.s32.totalorder %s27, 1
      %p426 = por %p424, %p425
      %p427 = scmp.ne.s32.totalorder %s419, %s422
      %p428 = scmp.eq.s32.totalorder %s27, 0
      %p429 = por %p427, %p428
      %p430 = scmp.ne.s32.totalorder %s419, %s422
      %p431 = scmp.eq.s32.totalorder %s32, 1
      %p432 = por %p430, %p431
      %p433 = scmp.ne.s32.totalorder %s422, %s423
      %p434 = scmp.eq.s32.totalorder %s32, 0
      %p435 = por %p433, %p434
      %p436 = scmp.ne.s32.totalorder %s422, %s423
      %p437 = scmp.eq.s32.totalorder %s33, 1
      %p438 = por %p436, %p437
      %p440 = scmp.ne.s32.totalorder %s423, %s439
      %p441 = scmp.eq.s32.totalorder %s33, 0
      %p442 = por %p440, %p441
      %p443 = scmp.le.s32.totalorder 1, %s27
      %p444 = scmp.lt.s32.totalorder %s27, 3
      %p445 = pnand %p443, %p444
      %p446 = pneg %p445
      // Predicated region
      $region9: #{tpu_custom_call.1} parent=5 // pred_check
        _
      $region10: #{tpu_custom_call.1} parent=5 // pred_check_branch
        %448 = sbr.rel (%p445) target = $region12
      $region11: #{tpu_custom_call.1} parent=5 // pred_region
        %s449 = ssub.s32 %s27, 1
        // Predicated region
        $region13: #{tpu_custom_call.1} parent=11 // pred_check
          %p450 = pneg %p152
        $region14: #{tpu_custom_call.1} parent=11 // pred_check_branch
          %452 = sbr.rel (%p450) target = $region16
        $region15: #{tpu_custom_call.1} parent=11 // pred_region
          _
        $region16: #{tpu_custom_call.1} parent=11 // pred_fallthru
          _
        // Predicated region
        $region17: #{tpu_custom_call.1} parent=11 // pred_check
          %p453 = pneg %p173
        $region18: #{tpu_custom_call.1} parent=11 // pred_check_branch
          %455 = sbr.rel (%p453) target = $region20
        $region19: #{tpu_custom_call.1} parent=11 // pred_region
          _
        $region20: #{tpu_custom_call.1} parent=11 // pred_fallthru
          _
        // Predicated region
        $region21: #{tpu_custom_call.1} parent=11 // pred_check
          %p456 = pneg %p194
        $region22: #{tpu_custom_call.1} parent=11 // pred_check_branch
          %458 = sbr.rel (%p456) target = $region24
        $region23: #{tpu_custom_call.1} parent=11 // pred_region
          _
        $region24: #{tpu_custom_call.1} parent=11 // pred_fallthru
          _
        // Predicated region
        $region25: #{tpu_custom_call.1} parent=11 // pred_check
          %p459 = pneg %p215
        $region26: #{tpu_custom_call.1} parent=11 // pred_check_branch
          %461 = sbr.rel (%p459) target = $region28
        $region27: #{tpu_custom_call.1} parent=11 // pred_region
          _
        $region28: #{tpu_custom_call.1} parent=11 // pred_fallthru
          _
        // Predicated region
        $region29: #{tpu_custom_call.1} parent=11 // pred_check
          %p462 = pneg %p236
        $region30: #{tpu_custom_call.1} parent=11 // pred_check_branch
          %464 = sbr.rel (%p462) target = $region32
        $region31: #{tpu_custom_call.1} parent=11 // pred_region
          _
        $region32: #{tpu_custom_call.1} parent=11 // pred_fallthru
          _
        // Predicated region
        $region33: #{tpu_custom_call.1} parent=11 // pred_check
          %p465 = pneg %p257
        $region34: #{tpu_custom_call.1} parent=11 // pred_check_branch
          %467 = sbr.rel (%p465) target = $region36
        $region35: #{tpu_custom_call.1} parent=11 // pred_region
          _
        $region36: #{tpu_custom_call.1} parent=11 // pred_fallthru
          _
        // Predicated region
        $region37: #{tpu_custom_call.1} parent=11 // pred_check
          %p468 = pneg %p278
        $region38: #{tpu_custom_call.1} parent=11 // pred_check_branch
          %470 = sbr.rel (%p468) target = $region40
        $region39: #{tpu_custom_call.1} parent=11 // pred_region
          _
        $region40: #{tpu_custom_call.1} parent=11 // pred_fallthru
          _
        // Predicated region
        $region41: #{tpu_custom_call.1} parent=11 // pred_check
          %p471 = pneg %p299
        $region42: #{tpu_custom_call.1} parent=11 // pred_check_branch
          %473 = sbr.rel (%p471) target = $region44
        $region43: #{tpu_custom_call.1} parent=11 // pred_region
          _
        $region44: #{tpu_custom_call.1} parent=11 // pred_fallthru
          _
        // Predicated region
        $region45: #{tpu_custom_call.1} parent=11 // pred_check
          %p474 = pneg %p320
        $region46: #{tpu_custom_call.1} parent=11 // pred_check_branch
          %476 = sbr.rel (%p474) target = $region48
        $region47: #{tpu_custom_call.1} parent=11 // pred_region
          _
        $region48: #{tpu_custom_call.1} parent=11 // pred_fallthru
          _
        // Predicated region
        $region49: #{tpu_custom_call.1} parent=11 // pred_check
          %p477 = pneg %p341
        $region50: #{tpu_custom_call.1} parent=11 // pred_check_branch
          %479 = sbr.rel (%p477) target = $region52
        $region51: #{tpu_custom_call.1} parent=11 // pred_region
          _
        $region52: #{tpu_custom_call.1} parent=11 // pred_fallthru
          _
        // Predicated region
        $region53: #{tpu_custom_call.1} parent=11 // pred_check
          %p480 = pneg %p362
        $region54: #{tpu_custom_call.1} parent=11 // pred_check_branch
          %482 = sbr.rel (%p480) target = $region56
        $region55: #{tpu_custom_call.1} parent=11 // pred_region
          _
        $region56: #{tpu_custom_call.1} parent=11 // pred_fallthru
          _
        // Predicated region
        $region57: #{tpu_custom_call.1} parent=11 // pred_check
          %p483 = pneg %p383
        $region58: #{tpu_custom_call.1} parent=11 // pred_check_branch
          %485 = sbr.rel (%p483) target = $region60
        $region59: #{tpu_custom_call.1} parent=11 // pred_region
          _
        $region60: #{tpu_custom_call.1} parent=11 // pred_fallthru
          _
      $region12: #{tpu_custom_call.1} parent=5 // pred_fallthru
        _
      %p486 = scmp.lt.s32.totalorder %s27, 2
      // Predicated region
      $region61: #{tpu_custom_call.1} parent=5 // pred_check
        %p487 = pneg %p486
      $region62: #{tpu_custom_call.1} parent=5 // pred_check_branch
        %489 = sbr.rel (%p487) target = $region64
      $region63: #{tpu_custom_call.1} parent=5 // pred_region
        // Predicated region
        $region65: #{tpu_custom_call.1} parent=63 // pred_check
          %p490 = pneg %p47
        $region66: #{tpu_custom_call.1} parent=63 // pred_check_branch
          %492 = sbr.rel (%p490) target = $region68
        $region67: #{tpu_custom_call.1} parent=63 // pred_region
          %p493 = scmp.lt.s32.totalorder %s27, 1
          %s494 = scalar_select %p493, %s27, 1
          %s495 = smul.addr %s494, 8
          %s496 = scalar_lea.vmem %s0, %s495
        $region68: #{tpu_custom_call.1} parent=63 // pred_fallthru
          _
        // Predicated region
        $region69: #{tpu_custom_call.1} parent=63 // pred_check
          %p497 = pneg %p73
        $region70: #{tpu_custom_call.1} parent=63 // pred_check_branch
          %499 = sbr.rel (%p497) target = $region72
        $region71: #{tpu_custom_call.1} parent=63 // pred_region
          %p500 = scmp.lt.s32.totalorder %s27, 1
          %s501 = scalar_select %p500, %s27, 1
          %s502 = smul.addr %s501, 8
          %s503 = scalar_lea.vmem %s1, %s502
        $region72: #{tpu_custom_call.1} parent=63 // pred_fallthru
          _
        // Predicated region
        $region73: #{tpu_custom_call.1} parent=63 // pred_check
          %p504 = pneg %p99
        $region74: #{tpu_custom_call.1} parent=63 // pred_check_branch
          %506 = sbr.rel (%p504) target = $region76
        $region75: #{tpu_custom_call.1} parent=63 // pred_region
          %p507 = scmp.lt.s32.totalorder %s27, 1
          %s508 = scalar_select %p507, %s27, 1
          %s509 = smul.addr %s508, 2
          %s510 = smul.addr %s509, 4
          %s511 = scalar_lea.vmem %s2, %s510
        $region76: #{tpu_custom_call.1} parent=63 // pred_fallthru
          _
        // Predicated region
        $region77: #{tpu_custom_call.1} parent=63 // pred_check
          %p512 = pneg %p125
        $region78: #{tpu_custom_call.1} parent=63 // pred_check_branch
          %514 = sbr.rel (%p512) target = $region80
        $region79: #{tpu_custom_call.1} parent=63 // pred_region
          %p515 = scmp.lt.s32.totalorder %s27, 1
          %s516 = scalar_select %p515, %s27, 1
          %s517 = smul.addr %s516, 4
          %s518 = smul.addr %s517, 8
          %s519 = scalar_lea.vmem %s3, %s518
        $region80: #{tpu_custom_call.1} parent=63 // pred_fallthru
          _
      $region64: #{tpu_custom_call.1} parent=5 // pred_fallthru
        _
      %p520 = scmp.le.s32.totalorder 1, %s27
      %p521 = scmp.lt.s32.totalorder %s27, 3
      %p522 = pnand %p520, %p521
      %p523 = pneg %p522
      // Predicated region
      $region81: #{tpu_custom_call.1} parent=5 // pred_check
        _
      $region82: #{tpu_custom_call.1} parent=5 // pred_check_branch
        %525 = sbr.rel (%p522) target = $region84
      $region83: #{tpu_custom_call.1} parent=5 // pred_region
        %s526 = ssub.s32 %s27, 1
        %p527 = scmp.lt.s32.totalorder %s32, 1
        %s528 = scalar_select %p527, %s32, 1
        %s529 = smul.addr %s528, 8
        %s530 = scalar_lea.vmem %s0, %s529
        %p531 = pneg %p53
        %p532 = pneg %p50
        %p533 = scmp.lt.s32.totalorder %s32, 1
        %s534 = scalar_select %p533, %s32, 1
        %s535 = smul.addr %s534, 8
        %s536 = scalar_lea.vmem %s1, %s535
        %p537 = pneg %p79
        %p538 = pneg %p76
        %p539 = scmp.lt.s32.totalorder %s32, 1
        %s540 = scalar_select %p539, %s32, 1
        %s541 = smul.addr %s540, 2
        %s542 = smul.addr %s541, 4
        %s543 = scalar_lea.vmem %s2, %s542
        %p544 = pneg %p105
        %p545 = pneg %p102
        %p546 = scmp.lt.s32.totalorder %s32, 1
        %s547 = scalar_select %p546, %s32, 1
        %s548 = smul.addr %s547, 4
        %s549 = smul.addr %s548, 8
        %s550 = scalar_lea.vmem %s3, %s549
        %p551 = pneg %p131
        %p552 = pneg %p128
        %p553 = pneg %p152
        %p554 = pneg %p149
        %p555 = pneg %p173
        %p556 = pneg %p170
        %p557 = pneg %p194
        %p558 = pneg %p191
        %p559 = pneg %p215
        %p560 = pneg %p212
        %p561 = pneg %p236
        %p562 = pneg %p233
        %p563 = pneg %p257
        %p564 = pneg %p254
        %p565 = pneg %p278
        %p566 = pneg %p275
        %p567 = pneg %p299
        %p568 = pneg %p296
        %p569 = pneg %p320
        %p570 = pneg %p317
        %p571 = pneg %p341
        %p572 = pneg %p338
        %p573 = pneg %p362
        %p574 = pneg %p359
        %p575 = pneg %p383
        %p576 = pneg %p380
        %p577 = pneg %p409
        %p578 = pneg %p406
        %p579 = scmp.lt.s32.totalorder %s32, 1
        %s580 = scalar_select %p579, %s32, 1
        %s581 = smul.addr %s580, 3
        %s582 = smul.addr %s581, 8
        %s583 = scalar_lea.vmem %s16, %s582
        %p584 = pneg %p435
        %p585 = pneg %p432
        %s586 = sand.u32 %s422, 1
        %s587 = scalar_lea.sflag [#allocation3], %s586
        %s588 = sand.u32 %s422, 1
        %s589 = scalar_lea.vmem [#allocation2], %s588
        %p590 = scmp.lt.s32.totalorder %s32, 1
        %s591 = scalar_select %p590, %s32, 1
        %s592 = smul.addr %s591, 8
        %s593 = scalar_lea.vmem %s0, %s592
        %p594 = scmp.lt.s32.totalorder %s32, 1
        %s595 = scalar_select %p594, %s32, 1
        %s596 = smul.addr %s595, 8
        %s597 = scalar_lea.vmem %s1, %s596
        %p598 = scmp.lt.s32.totalorder %s32, 1
        %s599 = scalar_select %p598, %s32, 1
        %s600 = smul.addr %s599, 2
        %s601 = smul.addr %s600, 4
        %s602 = scalar_lea.vmem %s2, %s601
        %p603 = scmp.lt.s32.totalorder %s32, 1
        %s604 = scalar_select %p603, %s32, 1
        %s605 = smul.addr %s604, 4
        %s606 = smul.addr %s605, 8
        %s607 = scalar_lea.vmem %s3, %s606
        %p608 = scmp.lt.s32.totalorder %s32, 1
        %s609 = scalar_select %p608, %s32, 1
        %s610 = smul.addr %s609, 3
        %s611 = smul.addr %s610, 8
        %s612 = scalar_lea.vmem %s16, %s611
        %v614 = vld [vmem:[%s593] sm:$0xff]
        %v615 = vpack.c.bf16 %v614, %v614
        %v616 = vld [vmem:[%s4] sm:$0xf]
        %v617 = vld [vmem:[%s4 + $0x4] sm:$0xf]
        %v618 = vld [vmem:[%s5] sm:$0x1]
        %v620 = vlaneseq
        %v621 = vshrl.u32 %v620, 7
        %v622 = vsub.s32 0, %v621
        %v623 = vrot.slane %v618, %v622
        %v627 = vunpack.c.l.b16 %v616
        %v628 = vunpack.c.l.b16 %v617
        %v629 = vpack.c.b16 %v628, %v627
        %vm631 = vcmask 130048
        %v633 = vsel %vm631, %v615, 0
        %635 = vmatprep.subr.bf16.mxu0 0
        %636 = vmatpush1.bf16.msra.mxu0 0
        %637 = vmatprep.subr.bf16.mxu0 0
        %638 = vmatpush1.bf16.msra.mxu0 0
        %639 = vmatprep.subr.bf16.mxu0 0
        %640 = vmatpush1.bf16.msra.mxu0 0
        %641 = vmatprep.subr.bf16.mxu0 0
        %642 = vmatpush1.bf16.msra.mxu0 0
        %643 = vmatprep.subr.bf16.mxu0 0
        %644 = vmatpush1.bf16.msra.mxu0 0
        %645 = vmatprep.subr.bf16.mxu0 0
        %646 = vmatpush1.bf16.msra.mxu0 0
        %647 = vmatprep.subr.bf16.mxu0 0
        %648 = vmatpush1.bf16.msra.mxu0 0
        %649 = vmatprep.subr.bf16.mxu0 0
        %650 = vmatpush1.bf16.msra.mxu0 %v629
        %651 = vmatprep.subr.bf16.mxu0 0
        %652 = vmatpush2.bf16.msra.mxu0 0
        %653 = vmatprep.subr.bf16.mxu0 0
        %654 = vmatpush2.bf16.msra.mxu0 0
        %655 = vmatprep.subr.bf16.mxu0 0
        %656 = vmatpush2.bf16.msra.mxu0 0
        %657 = vmatprep.subr.bf16.mxu0 0
        %658 = vmatpush2.bf16.msra.mxu0 0
        %659 = vmatprep.subr.bf16.mxu0 0
        %660 = vmatpush2.bf16.msra.mxu0 0
        %661 = vmatprep.subr.bf16.mxu0 0
        %662 = vmatpush2.bf16.msra.mxu0 0
        %663 = vmatprep.subr.bf16.mxu0 0
        %664 = vmatpush2.bf16.msra.mxu0 0
        %665 = vmatprep.subr.bf16.mxu0 0
        %666 = vmatpush2.bf16.msra.mxu0 0
        %667 = vmatprep.mubr.bf16.mxu0 0
        %668 = vmatmul.mubr.bf16.gmra.mxu0 %v633
        %v669 = vpop.f32.mrf.mxu0
        %v670 = vadd.f32 %v623, %v669
        %v671 = vpop.f32.mrf.mxu0
        %v672 = vpop.f32.mrf.mxu0
        %v673 = vpop.f32.mrf.mxu0
        %674 = vdwg.mxu0
        %v675 = vmax.f32 %v670, 0.0
        %vm676 = vcmask 261120
        %v677 = vsel %vm676, %v675, 0.0
        %v678 = vrot.slane %v677, 4
        %v679 = vadd.f32 %v677, %v678
        %v680 = vrot.slane %v679, 2
        %v681 = vadd.f32 %v679, %v680
        %v682 = vrot.slane %v681, 1
        %v683 = vadd.f32 %v681, %v682
        %v684 = vrcp.pop 8.0
        %v685 = vmul.f32 %v683, %v684
        %v686 = vld [vmem:[%s597] sm:$0xff]
        %v687 = vpack.c.bf16 %v686, %v686
        %v689 = vsel %vm631, %v687, 0
        %691 = vmatprep.subr.bf16.mxu0 0
        %692 = vmatpush1.bf16.msra.mxu0 0
        %693 = vmatprep.subr.bf16.mxu0 0
        %694 = vmatpush1.bf16.msra.mxu0 0
        %695 = vmatprep.subr.bf16.mxu0 0
        %696 = vmatpush1.bf16.msra.mxu0 0
        %697 = vmatprep.subr.bf16.mxu0 0
        %698 = vmatpush1.bf16.msra.mxu0 0
        %699 = vmatprep.subr.bf16.mxu0 0
        %700 = vmatpush1.bf16.msra.mxu0 0
        %701 = vmatprep.subr.bf16.mxu0 0
        %702 = vmatpush1.bf16.msra.mxu0 0
        %703 = vmatprep.subr.bf16.mxu0 0
        %704 = vmatpush1.bf16.msra.mxu0 0
        %705 = vmatprep.subr.bf16.mxu0 0
        %706 = vmatpush1.bf16.msra.mxu0 %v629
        %707 = vmatprep.subr.bf16.mxu0 0
        %708 = vmatpush2.bf16.msra.mxu0 0
        %709 = vmatprep.subr.bf16.mxu0 0
        %710 = vmatpush2.bf16.msra.mxu0 0
        %711 = vmatprep.subr.bf16.mxu0 0
        %712 = vmatpush2.bf16.msra.mxu0 0
        %713 = vmatprep.subr.bf16.mxu0 0
        %714 = vmatpush2.bf16.msra.mxu0 0
        %715 = vmatprep.subr.bf16.mxu0 0
        %716 = vmatpush2.bf16.msra.mxu0 0
        %717 = vmatprep.subr.bf16.mxu0 0
        %718 = vmatpush2.bf16.msra.mxu0 0
        %719 = vmatprep.subr.bf16.mxu0 0
        %720 = vmatpush2.bf16.msra.mxu0 0
        %721 = vmatprep.subr.bf16.mxu0 0
        %722 = vmatpush2.bf16.msra.mxu0 0
        %723 = vmatprep.mubr.bf16.mxu0 0
        %724 = vmatmul.mubr.bf16.gmra.mxu0 %v689
        %v725 = vpop.f32.mrf.mxu0
        %v726 = vadd.f32 %v623, %v725
        %v727 = vpop.f32.mrf.mxu0
        %v728 = vpop.f32.mrf.mxu0
        %v729 = vpop.f32.mrf.mxu0
        %730 = vdwg.mxu0
        %v731 = vmax.f32 %v726, 0.0
        %v732 = vsel %vm676, %v731, 0.0
        %v733 = vrot.slane %v732, 4
        %v734 = vadd.f32 %v732, %v733
        %v735 = vrot.slane %v734, 2
        %v736 = vadd.f32 %v734, %v735
        %v737 = vrot.slane %v736, 1
        %v738 = vadd.f32 %v736, %v737
        %v739 = vmul.f32 %v738, %v684
        %vm740 = vcmask 253952
        %741 = vst.msk [vmem:[%s589] sm:$0x1] %vm740, %v685
        %v742 = vld [vmem:[%s602] sm:$0xff]
        %v744 = vcombine.high %v742, %v742
        %v746 = vpack.c.bf16 %v742, %v742
        %v747 = vpack.c.bf16 %v744, %v744
        %v748 = vld [vmem:[%s6] sm:$0xf]
        %v749 = vld [vmem:[%s6 + $0x4] sm:$0xf]
        %v750 = vld [vmem:[%s6 + $0x8] sm:$0xf]
        %v751 = vld [vmem:[%s6 + $0xc] sm:$0xf]
        %v752 = vld [vmem:[%s6 + $0x10] sm:$0xf]
        %v753 = vld [vmem:[%s6 + $0x14] sm:$0xf]
        %v754 = vld [vmem:[%s6 + $0x18] sm:$0xf]
        %v755 = vld [vmem:[%s6 + $0x1c] sm:$0xf]
        %v756 = vld [vmem:[%s6 + $0x20] sm:$0xf]
        %v757 = vld [vmem:[%s6 + $0x24] sm:$0xf]
        %v758 = vld [vmem:[%s6 + $0x28] sm:$0xf]
        %v759 = vld [vmem:[%s6 + $0x2c] sm:$0xf]
        %v760 = vld [vmem:[%s6 + $0x30] sm:$0xf]
        %v761 = vld [vmem:[%s6 + $0x34] sm:$0xf]
        %v762 = vld [vmem:[%s6 + $0x38] sm:$0xf]
        %v763 = vld [vmem:[%s6 + $0x3c] sm:$0xf]
        %v764 = vld [vmem:[%s6 + $0x40] sm:$0xf]
        %v765 = vld [vmem:[%s6 + $0x44] sm:$0xf]
        %v766 = vld [vmem:[%s6 + $0x48] sm:$0xf]
        %v767 = vld [vmem:[%s6 + $0x4c] sm:$0xf]
        %v768 = vld [vmem:[%s6 + $0x50] sm:$0xf]
        %v769 = vld [vmem:[%s6 + $0x54] sm:$0xf]
        %v770 = vld [vmem:[%s6 + $0x58] sm:$0xf]
        %v771 = vld [vmem:[%s6 + $0x5c] sm:$0xf]
        %v772 = vld [vmem:[%s6 + $0x60] sm:$0xf]
        %v773 = vld [vmem:[%s6 + $0x64] sm:$0xf]
        %v774 = vld [vmem:[%s6 + $0x68] sm:$0xf]
        %v775 = vld [vmem:[%s6 + $0x6c] sm:$0xf]
        %v776 = vld [vmem:[%s6 + $0x70] sm:$0xf]
        %v777 = vld [vmem:[%s6 + $0x74] sm:$0xf]
        %v778 = vld [vmem:[%s6 + $0x78] sm:$0xf]
        %v779 = vld [vmem:[%s6 + $0x7c] sm:$0xf]
        %v780 = vld [vmem:[%s7] sm:$0x1]
        %v782 = vlaneseq
        %v783 = vshrl.u32 %v782, 7
        %v784 = vsub.s32 0, %v783
        %v785 = vrot.slane %v780, %v784
        %v819 = vunpack.c.l.b16 %v748
        %v820 = vunpack.c.l.b16 %v749
        %v821 = vunpack.c.l.b16 %v750
        %v822 = vunpack.c.l.b16 %v751
        %v823 = vunpack.c.l.b16 %v752
        %v824 = vunpack.c.l.b16 %v753
        %v825 = vunpack.c.l.b16 %v754
        %v826 = vunpack.c.l.b16 %v755
        %v827 = vunpack.c.l.b16 %v756
        %v828 = vunpack.c.l.b16 %v757
        %v829 = vunpack.c.l.b16 %v758
        %v830 = vunpack.c.l.b16 %v759
        %v831 = vunpack.c.l.b16 %v760
        %v832 = vunpack.c.l.b16 %v761
        %v833 = vunpack.c.l.b16 %v762
        %v834 = vunpack.c.l.b16 %v763
        %v835 = vunpack.c.l.b16 %v764
        %v836 = vunpack.c.l.b16 %v765
        %v837 = vunpack.c.l.b16 %v766
        %v838 = vunpack.c.l.b16 %v767
        %v839 = vunpack.c.l.b16 %v768
        %v840 = vunpack.c.l.b16 %v769
        %v841 = vunpack.c.l.b16 %v770
        %v842 = vunpack.c.l.b16 %v771
        %v843 = vunpack.c.l.b16 %v772
        %v844 = vunpack.c.l.b16 %v773
        %v845 = vunpack.c.l.b16 %v774
        %v846 = vunpack.c.l.b16 %v775
        %v847 = vunpack.c.l.b16 %v776
        %v848 = vunpack.c.l.b16 %v777
        %v849 = vunpack.c.l.b16 %v778
        %v850 = vunpack.c.l.b16 %v779
        %v851 = vpack.c.b16 %v820, %v819
        %v852 = vpack.c.b16 %v822, %v821
        %v853 = vpack.c.b16 %v824, %v823
        %v854 = vpack.c.b16 %v826, %v825
        %v855 = vpack.c.b16 %v828, %v827
        %v856 = vpack.c.b16 %v830, %v829
        %v857 = vpack.c.b16 %v832, %v831
        %v858 = vpack.c.b16 %v834, %v833
        %v859 = vpack.c.b16 %v836, %v835
        %v860 = vpack.c.b16 %v838, %v837
        %v861 = vpack.c.b16 %v840, %v839
        %v862 = vpack.c.b16 %v842, %v841
        %v863 = vpack.c.b16 %v844, %v843
        %v864 = vpack.c.b16 %v846, %v845
        %v865 = vpack.c.b16 %v848, %v847
        %v866 = vpack.c.b16 %v850, %v849
        %883 = vmatprep.subr.bf16.mxu0 0
        %884 = vmatpush1.bf16.msra.mxu0 %v858
        %885 = vmatprep.subr.bf16.mxu0 0
        %886 = vmatpush1.bf16.msra.mxu0 %v857
        %887 = vmatprep.subr.bf16.mxu0 0
        %888 = vmatpush1.bf16.msra.mxu0 %v856
        %889 = vmatprep.subr.bf16.mxu0 0
        %890 = vmatpush1.bf16.msra.mxu0 %v855
        %891 = vmatprep.subr.bf16.mxu0 0
        %892 = vmatpush1.bf16.msra.mxu0 %v854
        %893 = vmatprep.subr.bf16.mxu0 0
        %894 = vmatpush1.bf16.msra.mxu0 %v853
        %895 = vmatprep.subr.bf16.mxu0 0
        %896 = vmatpush1.bf16.msra.mxu0 %v852
        %897 = vmatprep.subr.bf16.mxu0 0
        %898 = vmatpush1.bf16.msra.mxu0 %v851
        %899 = vmatprep.subr.bf16.mxu0 0
        %900 = vmatpush2.bf16.msra.mxu0 %v866
        %901 = vmatprep.subr.bf16.mxu0 0
        %902 = vmatpush2.bf16.msra.mxu0 %v865
        %903 = vmatprep.subr.bf16.mxu0 0
        %904 = vmatpush2.bf16.msra.mxu0 %v864
        %905 = vmatprep.subr.bf16.mxu0 0
        %906 = vmatpush2.bf16.msra.mxu0 %v863
        %907 = vmatprep.subr.bf16.mxu0 0
        %908 = vmatpush2.bf16.msra.mxu0 %v862
        %909 = vmatprep.subr.bf16.mxu0 0
        %910 = vmatpush2.bf16.msra.mxu0 %v861
        %911 = vmatprep.subr.bf16.mxu0 0
        %912 = vmatpush2.bf16.msra.mxu0 %v860
        %913 = vmatprep.subr.bf16.mxu0 0
        %914 = vmatpush2.bf16.msra.mxu0 %v859
        %915 = vmatprep.mubr.bf16.mxu0 %v747
        %916 = vmatmul.mubr.bf16.gmra.mxu0 %v746
        %v917 = vpop.f32.mrf.mxu0
        %v918 = vadd.f32 %v785, %v917
        %v919 = vpop.f32.mrf.mxu0
        %v920 = vpop.f32.mrf.mxu0
        %v921 = vpop.f32.mrf.mxu0
        %922 = vdwg.mxu0
        %v923 = vadd.f32 %v918, %v685
        %v924 = vpack.c.bf16 %v923, %v923
        %v925 = vld [vmem:[%s8] sm:$0xf]
        %v926 = vld [vmem:[%s8 + $0x4] sm:$0xf]
        %v927 = vld [vmem:[%s8 + $0x8] sm:$0xf]
        %v928 = vld [vmem:[%s8 + $0xc] sm:$0xf]
        %v929 = vld [vmem:[%s9] sm:$0x1]
        %v931 = vlaneseq
        %v932 = vshrl.u32 %v931, 7
        %v933 = vsub.s32 0, %v932
        %v934 = vrot.slane %v929, %v933
        %v940 = vunpack.c.l.b16 %v925
        %v941 = vunpack.c.l.b16 %v926
        %v942 = vunpack.c.l.b16 %v927
        %v943 = vunpack.c.l.b16 %v928
        %v944 = vpack.c.b16 %v941, %v940
        %v945 = vpack.c.b16 %v943, %v942
        %v949 = vsel %vm676, %v924, 0
        %951 = vmatprep.subr.bf16.mxu0 0
        %952 = vmatpush1.bf16.msra.mxu0 0
        %953 = vmatprep.subr.bf16.mxu0 0
        %954 = vmatpush1.bf16.msra.mxu0 0
        %955 = vmatprep.subr.bf16.mxu0 0
        %956 = vmatpush1.bf16.msra.mxu0 0
        %957 = vmatprep.subr.bf16.mxu0 0
        %958 = vmatpush1.bf16.msra.mxu0 0
        %959 = vmatprep.subr.bf16.mxu0 0
        %960 = vmatpush1.bf16.msra.mxu0 0
        %961 = vmatprep.subr.bf16.mxu0 0
        %962 = vmatpush1.bf16.msra.mxu0 0
        %963 = vmatprep.subr.bf16.mxu0 0
        %964 = vmatpush1.bf16.msra.mxu0 %v945
        %965 = vmatprep.subr.bf16.mxu0 0
        %966 = vmatpush1.bf16.msra.mxu0 %v944
        %967 = vmatprep.subr.bf16.mxu0 0
        %968 = vmatpush2.bf16.msra.mxu0 0
        %969 = vmatprep.subr.bf16.mxu0 0
        %970 = vmatpush2.bf16.msra.mxu0 0
        %971 = vmatprep.subr.bf16.mxu0 0
        %972 = vmatpush2.bf16.msra.mxu0 0
        %973 = vmatprep.subr.bf16.mxu0 0
        %974 = vmatpush2.bf16.msra.mxu0 0
        %975 = vmatprep.subr.bf16.mxu0 0
        %976 = vmatpush2.bf16.msra.mxu0 0
        %977 = vmatprep.subr.bf16.mxu0 0
        %978 = vmatpush2.bf16.msra.mxu0 0
        %979 = vmatprep.subr.bf16.mxu0 0
        %980 = vmatpush2.bf16.msra.mxu0 0
        %981 = vmatprep.subr.bf16.mxu0 0
        %982 = vmatpush2.bf16.msra.mxu0 0
        %983 = vmatprep.mubr.bf16.mxu0 0
        %984 = vmatmul.mubr.bf16.gmra.mxu0 %v949
        %v985 = vpop.f32.mrf.mxu0
        %v986 = vadd.f32 %v934, %v985
        %v987 = vpop.f32.mrf.mxu0
        %v988 = vpop.f32.mrf.mxu0
        %v989 = vpop.f32.mrf.mxu0
        %990 = vdwg.mxu0
        %v991 = vmul.f32 %v986, %v986
        %v992 = vmul.f32 %v986, %v991
        %v993 = vmul.f32 %v992, 0.044715
        %v994 = vadd.f32 %v986, %v993
        %v995 = vmul.f32 %v994, 0.7978846
        %v996 = vtanh.pop %v995
        %v997 = vadd.f32 %v996, 1.0
        %v998 = vmul.f32 %v997, 0.5
        %v999 = vmul.f32 %v986, %v998
        %v1000 = vpack.c.bf16 %v999, %v999
        %v1001 = vld [vmem:[%s10] sm:$0xf]
        %v1002 = vld [vmem:[%s10 + $0x4] sm:$0xf]
        %v1003 = vld [vmem:[%s10 + $0x8] sm:$0xf]
        %v1004 = vld [vmem:[%s10 + $0xc] sm:$0xf]
        %v1005 = vld [vmem:[%s11] sm:$0x1]
        %v1007 = vlaneseq
        %v1008 = vshrl.u32 %v1007, 7
        %v1009 = vsub.s32 0, %v1008
        %v1010 = vrot.slane %v1005, %v1009
        %v1016 = vunpack.c.l.b16 %v1001
        %v1017 = vunpack.c.l.b16 %v1002
        %v1018 = vunpack.c.l.b16 %v1003
        %v1019 = vunpack.c.l.b16 %v1004
        %v1020 = vpack.c.b16 %v1017, %v1016
        %v1021 = vpack.c.b16 %v1019, %v1018
        %v1025 = vsel %vm676, %v1000, 0
        %1027 = vmatprep.subr.bf16.mxu0 0
        %1028 = vmatpush1.bf16.msra.mxu0 0
        %1029 = vmatprep.subr.bf16.mxu0 0
        %1030 = vmatpush1.bf16.msra.mxu0 0
        %1031 = vmatprep.subr.bf16.mxu0 0
        %1032 = vmatpush1.bf16.msra.mxu0 0
        %1033 = vmatprep.subr.bf16.mxu0 0
        %1034 = vmatpush1.bf16.msra.mxu0 0
        %1035 = vmatprep.subr.bf16.mxu0 0
        %1036 = vmatpush1.bf16.msra.mxu0 0
        %1037 = vmatprep.subr.bf16.mxu0 0
        %1038 = vmatpush1.bf16.msra.mxu0 0
        %1039 = vmatprep.subr.bf16.mxu0 0
        %1040 = vmatpush1.bf16.msra.mxu0 %v1021
        %1041 = vmatprep.subr.bf16.mxu0 0
        %1042 = vmatpush1.bf16.msra.mxu0 %v1020
        %1043 = vmatprep.subr.bf16.mxu0 0
        %1044 = vmatpush2.bf16.msra.mxu0 0
        %1045 = vmatprep.subr.bf16.mxu0 0
        %1046 = vmatpush2.bf16.msra.mxu0 0
        %1047 = vmatprep.subr.bf16.mxu0 0
        %1048 = vmatpush2.bf16.msra.mxu0 0
        %1049 = vmatprep.subr.bf16.mxu0 0
        %1050 = vmatpush2.bf16.msra.mxu0 0
        %1051 = vmatprep.subr.bf16.mxu0 0
        %1052 = vmatpush2.bf16.msra.mxu0 0
        %1053 = vmatprep.subr.bf16.mxu0 0
        %1054 = vmatpush2.bf16.msra.mxu0 0
        %1055 = vmatprep.subr.bf16.mxu0 0
        %1056 = vmatpush2.bf16.msra.mxu0 0
        %1057 = vmatprep.subr.bf16.mxu0 0
        %1058 = vmatpush2.bf16.msra.mxu0 0
        %1059 = vmatprep.mubr.bf16.mxu0 0
        %1060 = vmatmul.mubr.bf16.gmra.mxu0 %v1025
        %v1061 = vpop.f32.mrf.mxu0
        %v1062 = vadd.f32 %v1010, %v1061
        %v1063 = vpop.f32.mrf.mxu0
        %v1064 = vpop.f32.mrf.mxu0
        %v1065 = vpop.f32.mrf.mxu0
        %1066 = vdwg.mxu0
        %v1067 = vadd.f32 %v923, %v1062
        %v1068 = vld [vmem:[%s607] sm:$0xff]
        %v1069 = vld [vmem:[%s607 + $0x8] sm:$0xff]
        %v1070 = vld [vmem:[%s607 + $0x10] sm:$0xff]
        %v1071 = vld [vmem:[%s607 + $0x18] sm:$0xff]
        %v1072 = vpack.c.bf16 %v1070, %v1068
        %v1073 = vpack.c.bf16 %v1071, %v1069
        %1074 = vmatprep.subr.bf16.mxu0 0
        %1075 = vmatpush1.bf16.msra.mxu0 %v858
        %1076 = vmatprep.subr.bf16.mxu0 0
        %1077 = vmatpush1.bf16.msra.mxu0 %v857
        %1078 = vmatprep.subr.bf16.mxu0 0
        %1079 = vmatpush1.bf16.msra.mxu0 %v856
        %1080 = vmatprep.subr.bf16.mxu0 0
        %1081 = vmatpush1.bf16.msra.mxu0 %v855
        %1082 = vmatprep.subr.bf16.mxu0 0
        %1083 = vmatpush1.bf16.msra.mxu0 %v854
        %1084 = vmatprep.subr.bf16.mxu0 0
        %1085 = vmatpush1.bf16.msra.mxu0 %v853
        %1086 = vmatprep.subr.bf16.mxu0 0
        %1087 = vmatpush1.bf16.msra.mxu0 %v852
        %1088 = vmatprep.subr.bf16.mxu0 0
        %1089 = vmatpush1.bf16.msra.mxu0 %v851
        %1090 = vmatprep.subr.bf16.mxu0 0
        %1091 = vmatpush2.bf16.msra.mxu0 %v866
        %1092 = vmatprep.subr.bf16.mxu0 0
        %1093 = vmatpush2.bf16.msra.mxu0 %v865
        %1094 = vmatprep.subr.bf16.mxu0 0
        %1095 = vmatpush2.bf16.msra.mxu0 %v864
        %1096 = vmatprep.subr.bf16.mxu0 0
        %1097 = vmatpush2.bf16.msra.mxu0 %v863
        %1098 = vmatprep.subr.bf16.mxu0 0
        %1099 = vmatpush2.bf16.msra.mxu0 %v862
        %1100 = vmatprep.subr.bf16.mxu0 0
        %1101 = vmatpush2.bf16.msra.mxu0 %v861
        %1102 = vmatprep.subr.bf16.mxu0 0
        %1103 = vmatpush2.bf16.msra.mxu0 %v860
        %1104 = vmatprep.subr.bf16.mxu0 0
        %1105 = vmatpush2.bf16.msra.mxu0 %v859
        %1106 = vmatprep.mubr.bf16.mxu0 %v1073
        %1107 = vmatmul.mubr.bf16.gmra.mxu0 %v1072
        %v1108 = vpop.f32.mrf.mxu0
        %v1109 = vadd.f32 %v785, %v1108
        %v1110 = vpop.f32.mrf.mxu0
        %v1111 = vpop.f32.mrf.mxu0
        %v1112 = vadd.f32 %v785, %v1111
        %v1113 = vpop.f32.mrf.mxu0
        %1114 = vdwg.mxu0
        %v1115 = vadd.f32 %v1109, %v739
        %v1116 = vadd.f32 %v1112, %v739
        %v1117 = vpack.c.bf16 %v1116, %v1115
        %v1119 = vsel %vm676, %v1117, 0
        %1121 = vmatprep.subr.bf16.mxu0 0
        %1122 = vmatpush1.bf16.msra.mxu0 0
        %1123 = vmatprep.subr.bf16.mxu0 0
        %1124 = vmatpush1.bf16.msra.mxu0 0
        %1125 = vmatprep.subr.bf16.mxu0 0
        %1126 = vmatpush1.bf16.msra.mxu0 0
        %1127 = vmatprep.subr.bf16.mxu0 0
        %1128 = vmatpush1.bf16.msra.mxu0 0
        %1129 = vmatprep.subr.bf16.mxu0 0
        %1130 = vmatpush1.bf16.msra.mxu0 0
        %1131 = vmatprep.subr.bf16.mxu0 0
        %1132 = vmatpush1.bf16.msra.mxu0 0
        %1133 = vmatprep.subr.bf16.mxu0 0
        %1134 = vmatpush1.bf16.msra.mxu0 %v945
        %1135 = vmatprep.subr.bf16.mxu0 0
        %1136 = vmatpush1.bf16.msra.mxu0 %v944
        %1137 = vmatprep.subr.bf16.mxu0 0
        %1138 = vmatpush2.bf16.msra.mxu0 0
        %1139 = vmatprep.subr.bf16.mxu0 0
        %1140 = vmatpush2.bf16.msra.mxu0 0
        %1141 = vmatprep.subr.bf16.mxu0 0
        %1142 = vmatpush2.bf16.msra.mxu0 0
        %1143 = vmatprep.subr.bf16.mxu0 0
        %1144 = vmatpush2.bf16.msra.mxu0 0
        %1145 = vmatprep.subr.bf16.mxu0 0
        %1146 = vmatpush2.bf16.msra.mxu0 0
        %1147 = vmatprep.subr.bf16.mxu0 0
        %1148 = vmatpush2.bf16.msra.mxu0 0
        %1149 = vmatprep.subr.bf16.mxu0 0
        %1150 = vmatpush2.bf16.msra.mxu0 0
        %1151 = vmatprep.subr.bf16.mxu0 0
        %1152 = vmatpush2.bf16.msra.mxu0 0
        %1153 = vmatprep.mubr.bf16.mxu0 0
        %1154 = vmatmul.mubr.bf16.gmra.mxu0 %v1119
        %v1155 = vpop.f32.mrf.mxu0
        %v1156 = vadd.f32 %v934, %v1155
        %v1157 = vpop.f32.mrf.mxu0
        %v1158 = vpop.f32.mrf.mxu0
        %v1159 = vadd.f32 %v934, %v1158
        %v1160 = vpop.f32.mrf.mxu0
        %1161 = vdwg.mxu0
        %v1162 = vmul.f32 %v1156, %v1156
        %v1163 = vmul.f32 %v1159, %v1159
        %v1164 = vmul.f32 %v1156, %v1162
        %v1165 = vmul.f32 %v1159, %v1163
        %v1166 = vmul.f32 %v1164, 0.044715
        %v1167 = vmul.f32 %v1165, 0.044715
        %v1168 = vadd.f32 %v1156, %v1166
        %v1169 = vadd.f32 %v1159, %v1167
        %v1170 = vmul.f32 %v1168, 0.7978846
        %v1171 = vmul.f32 %v1169, 0.7978846
        %v1172 = vtanh.pop %v1170
        %v1173 = vtanh.pop %v1171
        %v1174 = vadd.f32 %v1172, 1.0
        %v1175 = vadd.f32 %v1173, 1.0
        %v1176 = vmul.f32 %v1174, 0.5
        %v1177 = vmul.f32 %v1175, 0.5
        %v1178 = vmul.f32 %v1156, %v1176
        %v1179 = vmul.f32 %v1159, %v1177
        %v1180 = vpack.c.bf16 %v1179, %v1178
        %v1182 = vsel %vm676, %v1180, 0
        %1184 = vmatprep.subr.bf16.mxu0 0
        %1185 = vmatpush1.bf16.msra.mxu0 0
        %1186 = vmatprep.subr.bf16.mxu0 0
        %1187 = vmatpush1.bf16.msra.mxu0 0
        %1188 = vmatprep.subr.bf16.mxu0 0
        %1189 = vmatpush1.bf16.msra.mxu0 0
        %1190 = vmatprep.subr.bf16.mxu0 0
        %1191 = vmatpush1.bf16.msra.mxu0 0
        %1192 = vmatprep.subr.bf16.mxu0 0
        %1193 = vmatpush1.bf16.msra.mxu0 0
        %1194 = vmatprep.subr.bf16.mxu0 0
        %1195 = vmatpush1.bf16.msra.mxu0 0
        %1196 = vmatprep.subr.bf16.mxu0 0
        %1197 = vmatpush1.bf16.msra.mxu0 %v1021
        %1198 = vmatprep.subr.bf16.mxu0 0
        %1199 = vmatpush1.bf16.msra.mxu0 %v1020
        %1200 = vmatprep.subr.bf16.mxu0 0
        %1201 = vmatpush2.bf16.msra.mxu0 0
        %1202 = vmatprep.subr.bf16.mxu0 0
        %1203 = vmatpush2.bf16.msra.mxu0 0
        %1204 = vmatprep.subr.bf16.mxu0 0
        %1205 = vmatpush2.bf16.msra.mxu0 0
        %1206 = vmatprep.subr.bf16.mxu0 0
        %1207 = vmatpush2.bf16.msra.mxu0 0
        %1208 = vmatprep.subr.bf16.mxu0 0
        %1209 = vmatpush2.bf16.msra.mxu0 0
        %1210 = vmatprep.subr.bf16.mxu0 0
        %1211 = vmatpush2.bf16.msra.mxu0 0
        %1212 = vmatprep.subr.bf16.mxu0 0
        %1213 = vmatpush2.bf16.msra.mxu0 0
        %1214 = vmatprep.subr.bf16.mxu0 0
        %1215 = vmatpush2.bf16.msra.mxu0 0
        %1216 = vmatprep.mubr.bf16.mxu0 0
        %1217 = vmatmul.mubr.bf16.gmra.mxu0 %v1182
        %v1218 = vpop.f32.mrf.mxu0
        %v1219 = vadd.f32 %v1010, %v1218
        %v1220 = vpop.f32.mrf.mxu0
        %v1221 = vpop.f32.mrf.mxu0
        %v1222 = vadd.f32 %v1010, %v1221
        %v1223 = vpop.f32.mrf.mxu0
        %1224 = vdwg.mxu0
        %v1225 = vadd.f32 %v1115, %v1219
        %v1226 = vadd.f32 %v1116, %v1222
        %vm1227 = vcmask 257024
        %v1228 = vsel %vm1227, %v1067, 0.0
        %v1229 = vrot.slane %v1228, 4
        %v1230 = vadd.f32 %v1228, %v1229
        %v1231 = vrot.slane %v1230, 2
        %v1232 = vadd.f32 %v1230, %v1231
        %v1233 = vrot.slane %v1232, 1
        %v1234 = vadd.f32 %v1232, %v1233
        %v1235 = vsel %vm676, %v1225, 0.0
        %v1236 = vsel %vm676, %v1226, 0.0
        %v1237 = vadd.f32 %v1235, %v1236
        %v1238 = vrot.slane %v1237, 4
        %v1239 = vadd.f32 %v1237, %v1238
        %v1240 = vrot.slane %v1239, 2
        %v1241 = vadd.f32 %v1239, %v1240
        %v1242 = vrot.slane %v1241, 1
        %v1243 = vadd.f32 %v1241, %v1242
        %v1244 = vadd.f32 %v1234, %v1243
        %v1245 = vmul.f32 %v1244, 0.05
        %v1246 = vadd.f32 %v1225, %v1245
        %v1247 = vadd.f32 %v1226, %v1245
        %v1248 = vpack.c.bf16 %v1247, %v1246
        %v1249 = vld [vmem:[%s12] sm:$0xf]
        %v1250 = vld [vmem:[%s12 + $0x4] sm:$0xf]
        %v1251 = vld [vmem:[%s12 + $0x8] sm:$0xf]
        %v1252 = vld [vmem:[%s12 + $0xc] sm:$0xf]
        %v1253 = vld [vmem:[%s13] sm:$0x1]
        %v1255 = vlaneseq
        %v1256 = vshrl.u32 %v1255, 7
        %v1257 = vsub.s32 0, %v1256
        %v1258 = vrot.slane %v1253, %v1257
        %v1264 = vunpack.c.l.b16 %v1249
        %v1265 = vunpack.c.l.b16 %v1250
        %v1266 = vunpack.c.l.b16 %v1251
        %v1267 = vunpack.c.l.b16 %v1252
        %v1268 = vpack.c.b16 %v1265, %v1264
        %v1269 = vpack.c.b16 %v1267, %v1266
        %v1273 = vsel %vm676, %v1248, 0
        %1275 = vmatprep.subr.bf16.mxu0 0
        %1276 = vmatpush1.bf16.msra.mxu0 0
        %1277 = vmatprep.subr.bf16.mxu0 0
        %1278 = vmatpush1.bf16.msra.mxu0 0
        %1279 = vmatprep.subr.bf16.mxu0 0
        %1280 = vmatpush1.bf16.msra.mxu0 0
        %1281 = vmatprep.subr.bf16.mxu0 0
        %1282 = vmatpush1.bf16.msra.mxu0 0
        %1283 = vmatprep.subr.bf16.mxu0 0
        %1284 = vmatpush1.bf16.msra.mxu0 0
        %1285 = vmatprep.subr.bf16.mxu0 0
        %1286 = vmatpush1.bf16.msra.mxu0 0
        %1287 = vmatprep.subr.bf16.mxu0 0
        %1288 = vmatpush1.bf16.msra.mxu0 %v1269
        %1289 = vmatprep.subr.bf16.mxu0 0
        %1290 = vmatpush1.bf16.msra.mxu0 %v1268
        %1291 = vmatprep.subr.bf16.mxu0 0
        %1292 = vmatpush2.bf16.msra.mxu0 0
        %1293 = vmatprep.subr.bf16.mxu0 0
        %1294 = vmatpush2.bf16.msra.mxu0 0
        %1295 = vmatprep.subr.bf16.mxu0 0
        %1296 = vmatpush2.bf16.msra.mxu0 0
        %1297 = vmatprep.subr.bf16.mxu0 0
        %1298 = vmatpush2.bf16.msra.mxu0 0
        %1299 = vmatprep.subr.bf16.mxu0 0
        %1300 = vmatpush2.bf16.msra.mxu0 0
        %1301 = vmatprep.subr.bf16.mxu0 0
        %1302 = vmatpush2.bf16.msra.mxu0 0
        %1303 = vmatprep.subr.bf16.mxu0 0
        %1304 = vmatpush2.bf16.msra.mxu0 0
        %1305 = vmatprep.subr.bf16.mxu0 0
        %1306 = vmatpush2.bf16.msra.mxu0 0
        %1307 = vmatprep.mubr.bf16.mxu0 0
        %1308 = vmatmul.mubr.bf16.gmra.mxu0 %v1273
        %v1309 = vpop.f32.mrf.mxu0
        %v1310 = vadd.f32 %v1258, %v1309
        %v1311 = vpop.f32.mrf.mxu0
        %v1312 = vpop.f32.mrf.mxu0
        %v1313 = vadd.f32 %v1258, %v1312
        %v1314 = vpop.f32.mrf.mxu0
        %1315 = vdwg.mxu0
        %v1316 = vmax.f32 %v1310, 0.0
        %v1317 = vmax.f32 %v1313, 0.0
        %v1318 = vpack.c.bf16 %v1317, %v1316
        %v1319 = vld [vmem:[%s14] sm:$0xf]
        %v1320 = vld [vmem:[%s14 + $0x4] sm:$0xf]
        %v1321 = vld [vmem:[%s14 + $0x8] sm:$0xf]
        %v1322 = vld [vmem:[%s14 + $0xc] sm:$0xf]
        %v1327 = vunpack.c.l.b16 %v1319
        %v1328 = vunpack.c.l.b16 %v1320
        %v1329 = vunpack.c.l.b16 %v1321
        %v1330 = vunpack.c.l.b16 %v1322
        %v1331 = vpack.c.b16 %v1328, %v1327
        %v1332 = vpack.c.b16 %v1330, %v1329
        %v1336 = vsel %vm676, %v1318, 0
        %1338 = vmatprep.subr.bf16.mxu0 0
        %1339 = vmatpush1.bf16.msra.mxu0 0
        %1340 = vmatprep.subr.bf16.mxu0 0
        %1341 = vmatpush1.bf16.msra.mxu0 0
        %1342 = vmatprep.subr.bf16.mxu0 0
        %1343 = vmatpush1.bf16.msra.mxu0 0
        %1344 = vmatprep.subr.bf16.mxu0 0
        %1345 = vmatpush1.bf16.msra.mxu0 0
        %1346 = vmatprep.subr.bf16.mxu0 0
        %1347 = vmatpush1.bf16.msra.mxu0 0
        %1348 = vmatprep.subr.bf16.mxu0 0
        %1349 = vmatpush1.bf16.msra.mxu0 0
        %1350 = vmatprep.subr.bf16.mxu0 0
        %1351 = vmatpush1.bf16.msra.mxu0 %v1332
        %1352 = vmatprep.subr.bf16.mxu0 0
        %1353 = vmatpush1.bf16.msra.mxu0 %v1331
        %1354 = vmatprep.subr.bf16.mxu0 0
        %1355 = vmatpush2.bf16.msra.mxu0 0
        %1356 = vmatprep.subr.bf16.mxu0 0
        %1357 = vmatpush2.bf16.msra.mxu0 0
        %1358 = vmatprep.subr.bf16.mxu0 0
        %1359 = vmatpush2.bf16.msra.mxu0 0
        %1360 = vmatprep.subr.bf16.mxu0 0
        %1361 = vmatpush2.bf16.msra.mxu0 0
        %1362 = vmatprep.subr.bf16.mxu0 0
        %1363 = vmatpush2.bf16.msra.mxu0 0
        %1364 = vmatprep.subr.bf16.mxu0 0
        %1365 = vmatpush2.bf16.msra.mxu0 0
        %1366 = vmatprep.subr.bf16.mxu0 0
        %1367 = vmatpush2.bf16.msra.mxu0 0
        %1368 = vmatprep.subr.bf16.mxu0 0
        %1369 = vmatpush2.bf16.msra.mxu0 0
        %1370 = vmatprep.mubr.bf16.mxu0 0
        %1371 = vmatmul.mubr.bf16.gmra.mxu0 %v1336
        %v1372 = vpop.f32.mrf.mxu0
        %v1373 = vadd.f32 0.0, %v1372
        %v1374 = vpop.f32.mrf.mxu0
        %v1375 = vpop.f32.mrf.mxu0
        %v1376 = vadd.f32 0.0, %v1375
        %v1377 = vpop.f32.mrf.mxu0
        %1378 = vdwg.mxu0
        %vm1379 = vcmask 15360
        %v1380 = vsel %vm1379, %v1373, -inf
        %v1381 = vsel %vm1379, %v1376, -inf
        %v1382 = vmax.f32 %v1380, %v1381
        %v1383 = vrot.slane %v1382, 4
        %v1384 = vmax.f32 %v1382, %v1383
        %v1385 = vrot.slane %v1384, 2
        %v1386 = vmax.f32 %v1384, %v1385
        %v1387 = vrot.slane %v1386, 1
        %v1388 = vmax.f32 %v1386, %v1387
        %v1389 = vsub.f32 %v1373, %v1388
        %v1390 = vsub.f32 %v1376, %v1388
        %v1391 = vmul.f32 %v1389, 1.442695
        %v1392 = vpow.pop %v1391
        %v1393 = vmul.f32 %v1390, 1.442695
        %v1394 = vpow.pop %v1393
        %v1395 = vsel %vm1379, %v1392, 0.0
        %v1396 = vsel %vm1379, %v1394, 0.0
        %v1397 = vadd.f32 %v1395, %v1396
        %v1398 = vrot.slane %v1397, 4
        %v1399 = vadd.f32 %v1397, %v1398
        %v1400 = vrot.slane %v1399, 2
        %v1401 = vadd.f32 %v1399, %v1400
        %v1402 = vrot.slane %v1401, 1
        %v1403 = vadd.f32 %v1401, %v1402
        %v1404 = vrcp.pop %v1403
        %v1405 = vmul.f32 %v1392, %v1404
        %v1406 = vmul.f32 %v1394, %v1404
        %v1407 = vld [vmem:[%s15] sm:$0xff]
        %v1408 = vld [vmem:[%s15 + $0x8] sm:$0xff]
        %1410 = vset.pattern.permute.xlu0 0
        %1411 = vperm.xlu0 %1410, %v1407
        %v1412 = vpop.permute.xlu0 %1411
        %1415 = vset.pattern.permute.xlu0 0
        %1416 = vperm.xlu0 %1415, %v1408
        %v1417 = vpop.permute.xlu0 %1416
        %v1419 = vmul.f32 %v1405, %v1412
        %v1420 = vmul.f32 %v1406, %v1417
        %v1421 = vsel %vm1379, %v1419, 0.0
        %v1422 = vsel %vm1379, %v1420, 0.0
        %v1423 = vadd.f32 %v1421, %v1422
        %v1424 = vrot.slane %v1423, 4
        %v1425 = vadd.f32 %v1423, %v1424
        %v1426 = vrot.slane %v1425, 2
        %v1427 = vadd.f32 %v1425, %v1426
        %v1428 = vrot.slane %v1427, 1
        %v1429 = vadd.f32 %v1427, %v1428
        %1430 = vset.pattern.permute.xlu0 1
        %1431 = vperm.xlu0 %1430, %v1407
        %v1432 = vpop.permute.xlu0 %1431
        %1434 = vset.pattern.permute.xlu0 1
        %1435 = vperm.xlu0 %1434, %v1408
        %v1436 = vpop.permute.xlu0 %1435
        %v1438 = vmul.f32 %v1405, %v1432
        %v1439 = vmul.f32 %v1406, %v1436
        %v1440 = vsel %vm1379, %v1438, 0.0
        %v1441 = vsel %vm1379, %v1439, 0.0
        %v1442 = vadd.f32 %v1440, %v1441
        %v1443 = vrot.slane %v1442, 4
        %v1444 = vadd.f32 %v1442, %v1443
        %v1445 = vrot.slane %v1444, 2
        %v1446 = vadd.f32 %v1444, %v1445
        %v1447 = vrot.slane %v1446, 1
        %v1448 = vadd.f32 %v1446, %v1447
        %1449 = vst.msk [vmem:[%s612] sm:$0xff] %vm1379, %v1405
        %1450 = vst.msk [vmem:[%s612 + $0x8] sm:$0xff] %vm1379, %v1406
        %vm1451 = vcmask 8192
        %1452 = vst.msk [vmem:[%s612 + $0x10] sm:$0x1] %vm1451, %v1429
        %1453 = vst.msk [vmem:[%s612 + $0x11] sm:$0x1] %vm1451, %v1448
        %p1454 = scmp.lt.s32.totalorder %s32, 1
        %s1455 = scalar_select %p1454, %s32, 1
        %s1456 = smul.addr %s1455, 3
        %s1457 = smul.addr %s1456, 8
        %s1458 = scalar_lea.vmem %s16, %s1457
        %s1459 = sand.u32 %s422, 1
        %s1460 = scalar_lea.sflag [#allocation3], %s1459
        %s1461 = sand.u32 %s422, 1
        %s1462 = scalar_lea.vmem [#allocation2], %s1461
        // Predicated region
        $region85: #{tpu_custom_call.1} parent=83 // pred_check
          %p1463 = pneg %p406
        $region86: #{tpu_custom_call.1} parent=83 // pred_check_branch
          %1465 = sbr.rel (%p1463) target = $region88
        $region87: #{tpu_custom_call.1} parent=83 // pred_region
          _
        $region88: #{tpu_custom_call.1} parent=83 // pred_fallthru
          _
        // Predicated region
        $region89: #{tpu_custom_call.1} parent=83 // pred_check
          %p1466 = pneg %p432
        $region90: #{tpu_custom_call.1} parent=83 // pred_check_branch
          %1468 = sbr.rel (%p1466) target = $region92
        $region91: #{tpu_custom_call.1} parent=83 // pred_region
          %s1470 = ssub.s32 16, 16
          %1471 = vsyncadd %s1460, %s1470
          %s1472 = smul.addr %s32, 16
          %s1473 = scalar_lea.hbm %s17, %s1472
          %s1475 = sshll.u32 %s1462, 4
          %s1476 = int_to_ptr.vmem [resolvable:$true] %s1475
          %1478 = dma.vmem_to_hbm [thread:$0]  %s1476, 16, %s1473, %s1460
        $region92: #{tpu_custom_call.1} parent=83 // pred_fallthru
          _
      $region84: #{tpu_custom_call.1} parent=5 // pred_fallthru
        _
      %p1479 = scmp.le.s32.totalorder 2, %s27
      // Predicated region
      $region93: #{tpu_custom_call.1} parent=5 // pred_check
        %p1480 = pneg %p1479
      $region94: #{tpu_custom_call.1} parent=5 // pred_check_branch
        %1482 = sbr.rel (%p1480) target = $region96
      $region95: #{tpu_custom_call.1} parent=5 // pred_region
        %s1483 = ssub.s32 %s27, 2
        // Predicated region
        $region97: #{tpu_custom_call.1} parent=95 // pred_check
          %p1484 = pneg %p412
        $region98: #{tpu_custom_call.1} parent=95 // pred_check_branch
          %1486 = sbr.rel (%p1484) target = $region100
        $region99: #{tpu_custom_call.1} parent=95 // pred_region
          %p1487 = scmp.lt.s32.totalorder %s33, 1
          %s1488 = scalar_select %p1487, %s33, 1
          %s1489 = smul.addr %s1488, 3
          %s1490 = smul.addr %s1489, 8
          %s1491 = scalar_lea.vmem %s16, %s1490
        $region100: #{tpu_custom_call.1} parent=95 // pred_fallthru
          _
        // Predicated region
        $region101: #{tpu_custom_call.1} parent=95 // pred_check
          %p1492 = pneg %p438
        $region102: #{tpu_custom_call.1} parent=95 // pred_check_branch
          %1494 = sbr.rel (%p1492) target = $region104
        $region103: #{tpu_custom_call.1} parent=95 // pred_region
          %s1495 = sand.u32 %s423, 1
          %s1496 = scalar_lea.sflag [#allocation3], %s1495
          %s1497 = sand.u32 %s423, 1
          %s1498 = scalar_lea.vmem [#allocation2], %s1497
          %1499 = dma.done %s1496, 16
        $region104: #{tpu_custom_call.1} parent=95 // pred_fallthru
          _
      $region96: #{tpu_custom_call.1} parent=5 // pred_fallthru
        _
    $region6: #{tpu_custom_call.1} parent=1 // loop_footer
      %s31 = sadd.s32 1, %s27
    $region7: #{tpu_custom_call.1} parent=1 // loop_footer_branch
      %26 = sbr.rel target = $region3
    $region8: #{tpu_custom_call.1} parent=1 // loop_exit
      _
    %1500 = vsyncpa [#allocation3], 1
    %s1501 = scalar_lea.sflag [#allocation3], 1
    %1502 = vsyncpa %s1501, 1

</llo_original>
